<compile_context>
chip_gen: v7x
topology: tpu7x:2x2x1
jax: 0.10.0
libtpu: 0.0.40
codegen_flags: <defaults>
</compile_context>

<pallas_src>
import functools
import numpy as np
import jax
import jax.numpy as jnp
from jax.experimental import pallas as pl
from jax.experimental.pallas import tpu as pltpu

LANE = 128
_VMEM = pl.BlockSpec(memory_space=pltpu.MemorySpace.VMEM)


def _round_up(v, m):
    return ((v + m - 1) // m) * m


# ---------------------------------------------------------------------------
# Kernel 1: fused map layer + all GCN_conv layers (single invocation, no grid)
# ---------------------------------------------------------------------------
def _gcn_stack_kernel(B, num_layer, *refs):
    x_ref, adj_ref, prop_ref, wx_ref, wadj_ref, mb_ref = refs[:6]
    layer_refs = refs[6:6 + 2 * num_layer]
    o_ref = refs[6 + 2 * num_layer]

    # map layer (use_cl=True):
    #   concat([x, adj_rep]) @ W + b  ==  x * W[0:1, :] + tile_B(adj @ W[1:, :] + b)
    base = (jnp.dot(adj_ref[...], wadj_ref[...], preferred_element_type=jnp.float32)
            + mb_ref[...])                                                  # (N, Din)
    emb = x_ref[...] * wx_ref[...] + jnp.concatenate([base] * B, axis=0)    # (B*N, Din)

    # GCN stack: feature transform (batch folded into M) + block-diag propagation.
    prop = prop_ref[...]              # (B*N, B*N) = kron(I_B, (adj + I) / (1 + deg))
    for l in range(num_layer):        # static unroll over layers
        w = layer_refs[2 * l][...]
        b = layer_refs[2 * l + 1][...]
        xw = jnp.dot(emb, w, preferred_element_type=jnp.float32)            # (B*N, Hp)
        emb = jnp.dot(prop, xw, preferred_element_type=jnp.float32) + b     # (B*N, Hp)

    o_ref[...] = emb                  # lane-dense (last dim padded to 128)


def pallas_gcn_stack(x, adj, prop, wx, wadj, mb, layers, B, N, h_pad):
    num_layer = len(layers)
    flat = []
    for (w, b) in layers:
        flat.extend([w, b])
    kernel = functools.partial(_gcn_stack_kernel, B, num_layer)
    n_in = 6 + len(flat)
    return pl.pallas_call(
        kernel,
        out_shape=jax.ShapeDtypeStruct((B * N, h_pad), jnp.float32),
        in_specs=[_VMEM] * n_in,
        out_specs=_VMEM,
    )(x, adj, prop, wx, wadj, mb, *flat)


# ---------------------------------------------------------------------------
# Kernel 2: fused readout MLP (inference):
#   h = x @ W1 + b1 ; h = BN_eval(h) ; h = relu(h) ; o = h @ W2 + b2
# ---------------------------------------------------------------------------
def _readout_kernel(x_ref, w1_ref, b1_ref, g_ref, be_ref, mu_ref, var_ref,
                    w2_ref, b2_ref, o_ref):
    h = jnp.dot(x_ref[...], w1_ref[...], preferred_element_type=jnp.float32) + b1_ref[...]
    h = (h - mu_ref[...]) * jax.lax.rsqrt(var_ref[...] + 1e-5) * g_ref[...] + be_ref[...]
    h = jnp.maximum(h, 0.0)                   # dropout (eval) = identity
    o_ref[...] = (
        jnp.dot(h, w2_ref[...], preferred_element_type=jnp.float32) + b2_ref[...]
    )


def pallas_readout(x, w1, b1, gamma, beta, mean, var, w2, b2):
    B = x.shape[0]
    o_pad = w2.shape[1]
    return pl.pallas_call(
        _readout_kernel,
        out_shape=jax.ShapeDtypeStruct((B, o_pad), jnp.float32),
        in_specs=[_VMEM] * 9,
        out_specs=_VMEM,
    )(x, w1, b1, gamma, beta, mean, var, w2, b2)


# ---------------------------------------------------------------------------
# Full GNN forward (param padding / reshapes in JAX, hot paths in the 2 kernels)
# ---------------------------------------------------------------------------
def gnn_forward(params, x, adj, batch_size, n_nodes):
    input_dim = params["map_w"].shape[1]
    hidden = params["gcn"][0][0].shape[1]
    out_hidden = params["ro_w1"].shape[1]
    out_dim = params["ro_w2"].shape[1]

    h_pad = _round_up(hidden, LANE)
    o_pad = _round_up(out_dim, LANE)

    # Propagation matrix hoisted out of the kernel (adj fixed across layers / batch):
    #   P = kron(I_B, (adj + I) * 1/(1+deg))  -> each GCN layer is  P @ (emb @ W) + b.
    inv_deg = 1.0 / (1.0 + jnp.sum(adj, axis=1, keepdims=True))             # (N, 1)
    p_block = (adj + jnp.eye(n_nodes, dtype=jnp.float32)) * inv_deg         # (N, N)
    prop = jnp.kron(jnp.eye(batch_size, dtype=jnp.float32), p_block)        # (B*N, B*N)

    # algebraic split of the map layer (no (B*N, N) adjacency replication).
    wx = params["map_w"][0:1, :]                                            # (1, Din)
    wadj = params["map_w"][1:, :]                                           # (N, Din)
    mb = params["map_b"]                                                    # (1, Din)

    # zero-pad GCN layer params so the embedding slab is lane-dense (last dim = h_pad).
    padded_layers = []
    for li, (w, b) in enumerate(params["gcn"]):
        k_in = w.shape[0]
        k_pad = input_dim if li == 0 else h_pad
        w_p = jnp.zeros((k_pad, h_pad), jnp.float32).at[:k_in, :w.shape[1]].set(w)
        b_p = jnp.zeros((1, h_pad), jnp.float32).at[:, :b.shape[1]].set(b)
        padded_layers.append((w_p, b_p))

    emb = pallas_gcn_stack(x, adj, prop, wx, wadj, mb, padded_layers,
                           batch_size, n_nodes, h_pad)                      # (B*N, h_pad)

    # free row-major reshape: (B*N, h_pad) -> (B, N*h_pad)
    h = emb.reshape(batch_size, n_nodes * h_pad)

    # pad W1 to match the padded hidden positions; pad W2/b2 to a lane-dense output slab.
    w1 = params["ro_w1"].reshape(n_nodes, hidden, out_hidden)
    w1_p = jnp.zeros((n_nodes, h_pad, out_hidden), jnp.float32).at[:, :hidden, :].set(w1)
    w1_p = w1_p.reshape(n_nodes * h_pad, out_hidden)
    w2_p = jnp.zeros((out_hidden, o_pad), jnp.float32).at[:, :out_dim].set(params["ro_w2"])
    b2_p = jnp.zeros((1, o_pad), jnp.float32).at[:, :out_dim].set(params["ro_b2"])

    out = pallas_readout(
        h, w1_p, params["ro_b1"],
        params["bn_gamma"], params["bn_beta"], params["bn_mean"], params["bn_var"],
        w2_p, b2_p)                                                         # (B, o_pad)
    return out[:, :out_dim]


# Pure-JAX reference mirroring the PyTorch module (inference).
def gnn_reference(params, x, adj, batch_size, n_nodes):
    A = jnp.concatenate([adj] * batch_size, axis=0)
    inp = jnp.concatenate([x, A], axis=-1)
    emb = inp @ params["map_w"] + params["map_b"]
    deg = 1.0 + jnp.sum(adj, axis=1, keepdims=True)
    for (w, b) in params["gcn"]:
        xw = emb @ w
        outs = []
        for bi in range(batch_size):
            xi = xw[bi * n_nodes:(bi + 1) * n_nodes]
            outs.append((adj @ xi + xi) / deg)
        emb = jnp.concatenate(outs, axis=0) + b
    h = emb.reshape(batch_size, -1)
    hh = h @ params["ro_w1"] + params["ro_b1"]
    hh = (hh - params["bn_mean"]) * jax.lax.rsqrt(params["bn_var"] + 1e-5) \
         * params["bn_gamma"] + params["bn_beta"]
    hh = jnp.maximum(hh, 0.0)
    return hh @ params["ro_w2"] + params["ro_b2"]


def init_params(key, n_nodes, input_dim, hidden_dim, out_dim, out_hidden, num_layer):
    ks = jax.random.split(key, 16)
    k_it = iter(ks)

    def uni(k, shape, fan_in):
        bound = float(np.sqrt(6.0 / fan_in))
        return jax.random.uniform(k, shape, jnp.float32, -bound, bound)

    params = {}
    # map_layer: Linear(1 + Nnodes, input_dim)
    params["map_w"] = uni(next(k_it), (1 + n_nodes, input_dim), 1 + n_nodes)
    params["map_b"] = jnp.zeros((1, input_dim), jnp.float32)
    # GCN_conv layers (kaiming-uniform weight, zero bias)
    gcn = []
    dims = [input_dim] + [hidden_dim] * num_layer
    for l in range(num_layer):
        w = uni(next(k_it), (dims[l], dims[l + 1]), dims[l])
        b = jnp.zeros((1, dims[l + 1]), jnp.float32)
        gcn.append((w, b))
    params["gcn"] = gcn
    # readout: Linear(N*hidden, out_hidden) -> BN(out_hidden) -> ReLU -> Linear(out_hidden, out_dim)
    in_dim = n_nodes * hidden_dim
    params["ro_w1"] = uni(next(k_it), (in_dim, out_hidden), in_dim)
    params["ro_b1"] = jnp.zeros((1, out_hidden), jnp.float32)
    params["bn_gamma"] = jnp.ones((1, out_hidden), jnp.float32)
    params["bn_beta"] = jnp.zeros((1, out_hidden), jnp.float32)
    params["bn_mean"] = jnp.zeros((1, out_hidden), jnp.float32)
    params["bn_var"] = jnp.ones((1, out_hidden), jnp.float32)
    params["ro_w2"] = uni(next(k_it), (out_hidden, out_dim), out_hidden)
    params["ro_b2"] = jnp.zeros((1, out_dim), jnp.float32)
    return params


if __name__ == "__main__":
    # Small shapes consistent with the module's forward.
    Nnodes, input_dim, hidden_dim = 16, 8, 16
    out_dim, out_hidden, num_layer = 4, 32, 3
    batch_size = 2

    key = jax.random.PRNGKey(0)
    k_p, k_x, k_a = jax.random.split(key, 3)

    params = init_params(k_p, Nnodes, input_dim, hidden_dim, out_dim,
                         out_hidden, num_layer)

    # x: per-node scalar feature for every graph in the batch -> (B*N, 1)
    x = jax.random.uniform(k_x, (batch_size * Nnodes, 1), jnp.float32)
    # adj: shared (N, N) adjacency (dense, non-negative)
    adj = (jax.random.uniform(k_a, (Nnodes, Nnodes)) < 0.3).astype(jnp.float32)

    fwd = jax.jit(gnn_forward, static_argnums=(3, 4))
    out = jax.block_until_ready(fwd(params, x, adj, batch_size, Nnodes))

    ref = gnn_reference(params, x, adj, batch_size, Nnodes)
    np.testing.assert_allclose(np.asarray(out), np.asarray(ref), rtol=1e-4, atol=1e-4)

    assert out.shape == (batch_size, out_dim)
    print("KERNEL_OK")
</pallas_src>

<mosaic_0001>
module attributes {stable_mosaic.version = 11 : i64} {
  func.func @_gcn_stack_kernel(%arg0: memref<32x1xf32, #tpu.memory_space<vmem>>, %arg1: memref<16x16xf32, #tpu.memory_space<vmem>>, %arg2: memref<32x32xf32, #tpu.memory_space<vmem>>, %arg3: memref<1x8xf32, #tpu.memory_space<vmem>>, %arg4: memref<16x8xf32, #tpu.memory_space<vmem>>, %arg5: memref<1x8xf32, #tpu.memory_space<vmem>>, %arg6: memref<8x128xf32, #tpu.memory_space<vmem>>, %arg7: memref<1x128xf32, #tpu.memory_space<vmem>>, %arg8: memref<128x128xf32, #tpu.memory_space<vmem>>, %arg9: memref<1x128xf32, #tpu.memory_space<vmem>>, %arg10: memref<128x128xf32, #tpu.memory_space<vmem>>, %arg11: memref<1x128xf32, #tpu.memory_space<vmem>>, %arg12: memref<32x128xf32, #tpu.memory_space<vmem>>) attributes {dimension_semantics = [], scalar_prefetch = 0 : i64, scratch_operands = 0 : i64, tpu.core_type = #tpu.core_type<tc>} {
    %c0 = arith.constant 0 : index
    %c0_0 = arith.constant 0 : index
    %0 = vector.load %arg1[%c0, %c0_0] : memref<16x16xf32, #tpu.memory_space<vmem>>, vector<16x16xf32>
    %c0_1 = arith.constant 0 : index
    %c0_2 = arith.constant 0 : index
    %1 = vector.load %arg4[%c0_1, %c0_2] : memref<16x8xf32, #tpu.memory_space<vmem>>, vector<16x8xf32>
    %cst = arith.constant dense<0.000000e+00> : vector<16x8xf32>
    %2 = tpu.matmul %0, %1, %cst {dimension_numbers = #tpu.dot_dimension_numbers<[1], [0], [0], [1], [0, 0, 1, 1], [], []>} : vector<16x16xf32>, vector<16x8xf32>, vector<16x8xf32> -> vector<16x8xf32>
    %c0_3 = arith.constant 0 : index
    %c0_4 = arith.constant 0 : index
    %3 = vector.load %arg5[%c0_3, %c0_4] : memref<1x8xf32, #tpu.memory_space<vmem>>, vector<1x8xf32>
    %4 = vector.broadcast %3 : vector<1x8xf32> to vector<16x8xf32>
    %5 = arith.addf %2, %4 : vector<16x8xf32>
    %c0_5 = arith.constant 0 : index
    %c0_6 = arith.constant 0 : index
    %6 = vector.load %arg0[%c0_5, %c0_6] : memref<32x1xf32, #tpu.memory_space<vmem>>, vector<32x1xf32>
    %c0_7 = arith.constant 0 : index
    %c0_8 = arith.constant 0 : index
    %7 = vector.load %arg3[%c0_7, %c0_8] : memref<1x8xf32, #tpu.memory_space<vmem>>, vector<1x8xf32>
    %8 = vector.broadcast %6 : vector<32x1xf32> to vector<32x8xf32>
    %9 = vector.broadcast %7 : vector<1x8xf32> to vector<32x8xf32>
    %10 = arith.mulf %8, %9 : vector<32x8xf32>
    %11 = tpu.concatenate %5, %5 in 0 : vector<16x8xf32>, vector<16x8xf32> -> vector<32x8xf32>
    %12 = arith.addf %10, %11 : vector<32x8xf32>
    %c0_9 = arith.constant 0 : index
    %c0_10 = arith.constant 0 : index
    %13 = vector.load %arg2[%c0_9, %c0_10] : memref<32x32xf32, #tpu.memory_space<vmem>>, vector<32x32xf32>
    %c0_11 = arith.constant 0 : index
    %c0_12 = arith.constant 0 : index
    %14 = vector.load %arg6[%c0_11, %c0_12] : memref<8x128xf32, #tpu.memory_space<vmem>>, vector<8x128xf32>
    %c0_13 = arith.constant 0 : index
    %c0_14 = arith.constant 0 : index
    %15 = vector.load %arg7[%c0_13, %c0_14] : memref<1x128xf32, #tpu.memory_space<vmem>>, vector<1x128xf32>
    %cst_15 = arith.constant dense<0.000000e+00> : vector<32x128xf32>
    %16 = tpu.matmul %12, %14, %cst_15 {dimension_numbers = #tpu.dot_dimension_numbers<[1], [0], [0], [1], [0, 0, 1, 1], [], []>} : vector<32x8xf32>, vector<8x128xf32>, vector<32x128xf32> -> vector<32x128xf32>
    %cst_16 = arith.constant dense<0.000000e+00> : vector<32x128xf32>
    %17 = tpu.matmul %13, %16, %cst_16 {dimension_numbers = #tpu.dot_dimension_numbers<[1], [0], [0], [1], [0, 0, 1, 1], [], []>} : vector<32x32xf32>, vector<32x128xf32>, vector<32x128xf32> -> vector<32x128xf32>
    %18 = vector.broadcast %15 : vector<1x128xf32> to vector<32x128xf32>
    %19 = arith.addf %17, %18 : vector<32x128xf32>
    %c0_17 = arith.constant 0 : index
    %c0_18 = arith.constant 0 : index
    %20 = vector.load %arg8[%c0_17, %c0_18] : memref<128x128xf32, #tpu.memory_space<vmem>>, vector<128x128xf32>
    %c0_19 = arith.constant 0 : index
    %c0_20 = arith.constant 0 : index
    %21 = vector.load %arg9[%c0_19, %c0_20] : memref<1x128xf32, #tpu.memory_space<vmem>>, vector<1x128xf32>
    %cst_21 = arith.constant dense<0.000000e+00> : vector<32x128xf32>
    %22 = tpu.matmul %19, %20, %cst_21 {dimension_numbers = #tpu.dot_dimension_numbers<[1], [0], [0], [1], [0, 0, 1, 1], [], []>} : vector<32x128xf32>, vector<128x128xf32>, vector<32x128xf32> -> vector<32x128xf32>
    %cst_22 = arith.constant dense<0.000000e+00> : vector<32x128xf32>
    %23 = tpu.matmul %13, %22, %cst_22 {dimension_numbers = #tpu.dot_dimension_numbers<[1], [0], [0], [1], [0, 0, 1, 1], [], []>} : vector<32x32xf32>, vector<32x128xf32>, vector<32x128xf32> -> vector<32x128xf32>
    %24 = vector.broadcast %21 : vector<1x128xf32> to vector<32x128xf32>
    %25 = arith.addf %23, %24 : vector<32x128xf32>
    %c0_23 = arith.constant 0 : index
    %c0_24 = arith.constant 0 : index
    %26 = vector.load %arg10[%c0_23, %c0_24] : memref<128x128xf32, #tpu.memory_space<vmem>>, vector<128x128xf32>
    %c0_25 = arith.constant 0 : index
    %c0_26 = arith.constant 0 : index
    %27 = vector.load %arg11[%c0_25, %c0_26] : memref<1x128xf32, #tpu.memory_space<vmem>>, vector<1x128xf32>
    %cst_27 = arith.constant dense<0.000000e+00> : vector<32x128xf32>
    %28 = tpu.matmul %25, %26, %cst_27 {dimension_numbers = #tpu.dot_dimension_numbers<[1], [0], [0], [1], [0, 0, 1, 1], [], []>} : vector<32x128xf32>, vector<128x128xf32>, vector<32x128xf32> -> vector<32x128xf32>
    %cst_28 = arith.constant dense<0.000000e+00> : vector<32x128xf32>
    %29 = tpu.matmul %13, %28, %cst_28 {dimension_numbers = #tpu.dot_dimension_numbers<[1], [0], [0], [1], [0, 0, 1, 1], [], []>} : vector<32x32xf32>, vector<32x128xf32>, vector<32x128xf32> -> vector<32x128xf32>
    %30 = vector.broadcast %27 : vector<1x128xf32> to vector<32x128xf32>
    %31 = arith.addf %29, %30 : vector<32x128xf32>
    %c0_29 = arith.constant 0 : index
    %c0_30 = arith.constant 0 : index
    %32 = vector.load %arg12[%c0_29, %c0_30] : memref<32x128xf32, #tpu.memory_space<vmem>>, vector<32x128xf32>
    tpu.vector_store %arg12[%c0_29, %c0_30], %31 {strides = array<i32>} : memref<32x128xf32, #tpu.memory_space<vmem>>, vector<32x128xf32>,
    return
  }
}

module attributes {stable_mosaic.version = 11 : i64} {
  func.func @_readout_kernel(%arg0: memref<2x2048xf32, #tpu.memory_space<vmem>>, %arg1: memref<2048x32xf32, #tpu.memory_space<vmem>>, %arg2: memref<1x32xf32, #tpu.memory_space<vmem>>, %arg3: memref<1x32xf32, #tpu.memory_space<vmem>>, %arg4: memref<1x32xf32, #tpu.memory_space<vmem>>, %arg5: memref<1x32xf32, #tpu.memory_space<vmem>>, %arg6: memref<1x32xf32, #tpu.memory_space<vmem>>, %arg7: memref<32x128xf32, #tpu.memory_space<vmem>>, %arg8: memref<1x128xf32, #tpu.memory_space<vmem>>, %arg9: memref<2x128xf32, #tpu.memory_space<vmem>>) attributes {dimension_semantics = [], scalar_prefetch = 0 : i64, scratch_operands = 0 : i64, tpu.core_type = #tpu.core_type<tc>} {
    %c0 = arith.constant 0 : index
    %c0_0 = arith.constant 0 : index
    %0 = vector.load %arg0[%c0, %c0_0] : memref<2x2048xf32, #tpu.memory_space<vmem>>, vector<2x2048xf32>
    %c0_1 = arith.constant 0 : index
    %c0_2 = arith.constant 0 : index
    %1 = vector.load %arg1[%c0_1, %c0_2] : memref<2048x32xf32, #tpu.memory_space<vmem>>, vector<2048x32xf32>
    %cst = arith.constant dense<0.000000e+00> : vector<2x32xf32>
    %2 = tpu.matmul %0, %1, %cst {dimension_numbers = #tpu.dot_dimension_numbers<[1], [0], [0], [1], [0, 0, 1, 1], [], []>} : vector<2x2048xf32>, vector<2048x32xf32>, vector<2x32xf32> -> vector<2x32xf32>
    %c0_3 = arith.constant 0 : index
    %c0_4 = arith.constant 0 : index
    %3 = vector.load %arg2[%c0_3, %c0_4] : memref<1x32xf32, #tpu.memory_space<vmem>>, vector<1x32xf32>
    %4 = vector.broadcast %3 : vector<1x32xf32> to vector<2x32xf32>
    %5 = arith.addf %2, %4 : vector<2x32xf32>
    %c0_5 = arith.constant 0 : index
    %c0_6 = arith.constant 0 : index
    %6 = vector.load %arg5[%c0_5, %c0_6] : memref<1x32xf32, #tpu.memory_space<vmem>>, vector<1x32xf32>
    %7 = vector.broadcast %6 : vector<1x32xf32> to vector<2x32xf32>
    %8 = arith.subf %5, %7 : vector<2x32xf32>
    %c0_7 = arith.constant 0 : index
    %c0_8 = arith.constant 0 : index
    %9 = vector.load %arg6[%c0_7, %c0_8] : memref<1x32xf32, #tpu.memory_space<vmem>>, vector<1x32xf32>
    %cst_9 = arith.constant 9.99999974E-6 : f32
    %10 = vector.broadcast %cst_9 : f32 to vector<1x32xf32>
    %11 = arith.addf %9, %10 : vector<1x32xf32>
    %12 = math.rsqrt %11 : vector<1x32xf32>
    %13 = vector.broadcast %12 : vector<1x32xf32> to vector<2x32xf32>
    %14 = arith.mulf %8, %13 : vector<2x32xf32>
    %c0_10 = arith.constant 0 : index
    %c0_11 = arith.constant 0 : index
    %15 = vector.load %arg3[%c0_10, %c0_11] : memref<1x32xf32, #tpu.memory_space<vmem>>, vector<1x32xf32>
    %16 = vector.broadcast %15 : vector<1x32xf32> to vector<2x32xf32>
    %17 = arith.mulf %14, %16 : vector<2x32xf32>
    %c0_12 = arith.constant 0 : index
    %c0_13 = arith.constant 0 : index
    %18 = vector.load %arg4[%c0_12, %c0_13] : memref<1x32xf32, #tpu.memory_space<vmem>>, vector<1x32xf32>
    %19 = vector.broadcast %18 : vector<1x32xf32> to vector<2x32xf32>
    %20 = arith.addf %17, %19 : vector<2x32xf32>
    %cst_14 = arith.constant 0.000000e+00 : f32
    %21 = vector.broadcast %cst_14 : f32 to vector<2x32xf32>
    %22 = arith.maximumf %20, %21 : vector<2x32xf32>
    %c0_15 = arith.constant 0 : index
    %c0_16 = arith.constant 0 : index
    %23 = vector.load %arg7[%c0_15, %c0_16] : memref<32x128xf32, #tpu.memory_space<vmem>>, vector<32x128xf32>
    %cst_17 = arith.constant dense<0.000000e+00> : vector<2x128xf32>
    %24 = tpu.matmul %22, %23, %cst_17 {dimension_numbers = #tpu.dot_dimension_numbers<[1], [0], [0], [1], [0, 0, 1, 1], [], []>} : vector<2x32xf32>, vector<32x128xf32>, vector<2x128xf32> -> vector<2x128xf32>
    %c0_18 = arith.constant 0 : index
    %c0_19 = arith.constant 0 : index
    %25 = vector.load %arg8[%c0_18, %c0_19] : memref<1x128xf32, #tpu.memory_space<vmem>>, vector<1x128xf32>
    %26 = vector.broadcast %25 : vector<1x128xf32> to vector<2x128xf32>
    %27 = arith.addf %24, %26 : vector<2x128xf32>
    %c0_20 = arith.constant 0 : index
    %c0_21 = arith.constant 0 : index
    %28 = vector.load %arg9[%c0_20, %c0_21] : memref<2x128xf32, #tpu.memory_space<vmem>>, vector<2x128xf32>
    tpu.vector_store %arg9[%c0_20, %c0_21], %27 {strides = array<i32>} : memref<2x128xf32, #tpu.memory_space<vmem>>, vector<2x128xf32>,
    return
  }
}

</mosaic_0001>

<llo_original>
// kernel: gnn_forward.2
$region0: #{gnn_forward.2}
  #allocation0 [shape = 'u32[]', space=smem, size = 0x4, offset = 0x4, fixed_abs, tag = 'smem constant byte address 0x4 - core index']
  #allocation1 [shape = 'u32[144,128]{1,0:T(1,128)}', space=vmem, size = 0x12000, scoped, tag = 'internal scratch']
  %s0 = inlined_call_operand.vmem [shape: f32[32,1], index: 0, kind: input, shape index: {}]
  %s1 = inlined_call_operand.vmem [shape: f32[16,16], index: 1, kind: input, shape index: {}]
  %s2 = inlined_call_operand.vmem [shape: f32[32,32], index: 2, kind: input, shape index: {}]
  %s3 = inlined_call_operand.vmem [shape: f32[1,8], index: 3, kind: input, shape index: {}]
  %s4 = inlined_call_operand.vmem [shape: f32[16,8], index: 4, kind: input, shape index: {}]
  %s5 = inlined_call_operand.vmem [shape: f32[1,8], index: 5, kind: input, shape index: {}]
  %s6 = inlined_call_operand.vmem [shape: f32[8,128], index: 6, kind: input, shape index: {}]
  %s7 = inlined_call_operand.vmem [shape: f32[1,128], index: 7, kind: input, shape index: {}]
  %s8 = inlined_call_operand.vmem [shape: f32[128,128], index: 8, kind: input, shape index: {}]
  %s9 = inlined_call_operand.vmem [shape: f32[1,128], index: 9, kind: input, shape index: {}]
  %s10 = inlined_call_operand.vmem [shape: f32[128,128], index: 10, kind: input, shape index: {}]
  %s11 = inlined_call_operand.vmem [shape: f32[1,128], index: 11, kind: input, shape index: {}]
  %s12 = inlined_call_operand.vmem [shape: f32[32,128], index: 12, kind: output, shape index: {}]
  %s13 = sld [smem:[#allocation0]]
  $region58: #{gnn_forward.2} parent=0
    _
  %s15 = ssub.s32 1, %s13
  %s16 = scalar_select 0, %s15, %s13
  // Predicated region
  $region2: #{gnn_forward.2} parent=0 // pred_check
    _
  $region3: #{gnn_forward.2} parent=0 // pred_check_branch
    %18 = sbr.rel (0) target = $region5
  $region4: #{gnn_forward.2} parent=0 // pred_region
    _
  $region5: #{gnn_forward.2} parent=0 // pred_fallthru
    _
  // Predicated region
  $region6: #{gnn_forward.2} parent=0 // pred_check
    _
  $region7: #{gnn_forward.2} parent=0 // pred_check_branch
    %20 = sbr.rel (0) target = $region9
  $region8: #{gnn_forward.2} parent=0 // pred_region
    _
  $region9: #{gnn_forward.2} parent=0 // pred_fallthru
    _
  // Predicated region
  $region10: #{gnn_forward.2} parent=0 // pred_check
    _
  $region11: #{gnn_forward.2} parent=0 // pred_check_branch
    %22 = sbr.rel (0) target = $region13
  $region12: #{gnn_forward.2} parent=0 // pred_region
    _
  $region13: #{gnn_forward.2} parent=0 // pred_fallthru
    _
  // Predicated region
  $region14: #{gnn_forward.2} parent=0 // pred_check
    _
  $region15: #{gnn_forward.2} parent=0 // pred_check_branch
    %24 = sbr.rel (0) target = $region17
  $region16: #{gnn_forward.2} parent=0 // pred_region
    _
  $region17: #{gnn_forward.2} parent=0 // pred_fallthru
    _
  // Predicated region
  $region18: #{gnn_forward.2} parent=0 // pred_check
    _
  $region19: #{gnn_forward.2} parent=0 // pred_check_branch
    %26 = sbr.rel (0) target = $region21
  $region20: #{gnn_forward.2} parent=0 // pred_region
    _
  $region21: #{gnn_forward.2} parent=0 // pred_fallthru
    _
  // Predicated region
  $region22: #{gnn_forward.2} parent=0 // pred_check
    _
  $region23: #{gnn_forward.2} parent=0 // pred_check_branch
    %28 = sbr.rel (0) target = $region25
  $region24: #{gnn_forward.2} parent=0 // pred_region
    _
  $region25: #{gnn_forward.2} parent=0 // pred_fallthru
    _
  // Predicated region
  $region26: #{gnn_forward.2} parent=0 // pred_check
    _
  $region27: #{gnn_forward.2} parent=0 // pred_check_branch
    %30 = sbr.rel (0) target = $region29
  $region28: #{gnn_forward.2} parent=0 // pred_region
    _
  $region29: #{gnn_forward.2} parent=0 // pred_fallthru
    _
  // Predicated region
  $region30: #{gnn_forward.2} parent=0 // pred_check
    _
  $region31: #{gnn_forward.2} parent=0 // pred_check_branch
    %32 = sbr.rel (0) target = $region33
  $region32: #{gnn_forward.2} parent=0 // pred_region
    _
  $region33: #{gnn_forward.2} parent=0 // pred_fallthru
    _
  // Predicated region
  $region34: #{gnn_forward.2} parent=0 // pred_check
    _
  $region35: #{gnn_forward.2} parent=0 // pred_check_branch
    %34 = sbr.rel (0) target = $region37
  $region36: #{gnn_forward.2} parent=0 // pred_region
    _
  $region37: #{gnn_forward.2} parent=0 // pred_fallthru
    _
  // Predicated region
  $region38: #{gnn_forward.2} parent=0 // pred_check
    _
  $region39: #{gnn_forward.2} parent=0 // pred_check_branch
    %36 = sbr.rel (0) target = $region41
  $region40: #{gnn_forward.2} parent=0 // pred_region
    _
  $region41: #{gnn_forward.2} parent=0 // pred_fallthru
    _
  // Predicated region
  $region42: #{gnn_forward.2} parent=0 // pred_check
    _
  $region43: #{gnn_forward.2} parent=0 // pred_check_branch
    %38 = sbr.rel (0) target = $region45
  $region44: #{gnn_forward.2} parent=0 // pred_region
    _
  $region45: #{gnn_forward.2} parent=0 // pred_fallthru
    _
  // Predicated region
  $region46: #{gnn_forward.2} parent=0 // pred_check
    _
  $region47: #{gnn_forward.2} parent=0 // pred_check_branch
    %40 = sbr.rel (0) target = $region49
  $region48: #{gnn_forward.2} parent=0 // pred_region
    _
  $region49: #{gnn_forward.2} parent=0 // pred_fallthru
    _
  %v41 = vld [vmem:[%s1] sm:$0xff]
  %v42 = vld [vmem:[%s1 + $0x8] sm:$0xff]
  %v43 = vld [vmem:[%s4] sm:$0xff]
  %v44 = vld [vmem:[%s4 + $0x8] sm:$0xff]
  %v45 = vld [vmem:[%s5] sm:$0x1]
  %v47 = vlaneseq
  %v48 = vshrl.u32 %v47, 7
  %v49 = vsub.s32 0, %v48
  %v50 = vrot.slane %v45, %v49
  %vm52 = vcmask 130048
  %v54 = vsel %vm52, %v41, 0
  %v57 = vsel %vm52, %v42, 0
  %59 = vmatprep.subr.mxu0 0.0
  %60 = vmatpush1.msra.mxu0 %v43
  %61 = vmatprep.subr.mxu0 0.0
  %62 = vmatpush1.msra.mxu0 %v44
  %63 = vmatprep.subr.mxu0 0.0
  %64 = vmatpush1.msra.mxu0 0.0
  %65 = vmatprep.subr.mxu0 0.0
  %66 = vmatpush1.msra.mxu0 0.0
  %67 = vmatprep.subr.mxu0 0.0
  %68 = vmatpush1.msra.mxu0 0.0
  %69 = vmatprep.subr.mxu0 0.0
  %70 = vmatpush1.msra.mxu0 0.0
  %71 = vmatprep.subr.mxu0 0.0
  %72 = vmatpush1.msra.mxu0 0.0
  %73 = vmatprep.subr.mxu0 0.0
  %74 = vmatpush1.msra.mxu0 0.0
  %75 = vmatprep.subr.mxu0 0.0
  %76 = vmatpush1.msra.mxu0 0.0
  %77 = vmatprep.subr.mxu0 0.0
  %78 = vmatpush1.msra.mxu0 0.0
  %79 = vmatprep.subr.mxu0 0.0
  %80 = vmatpush1.msra.mxu0 0.0
  %81 = vmatprep.subr.mxu0 0.0
  %82 = vmatpush1.msra.mxu0 0.0
  %83 = vmatprep.subr.mxu0 0.0
  %84 = vmatpush1.msra.mxu0 0.0
  %85 = vmatprep.subr.mxu0 0.0
  %86 = vmatpush1.msra.mxu0 0.0
  %87 = vmatprep.subr.mxu0 0.0
  %88 = vmatpush1.msra.mxu0 0.0
  %89 = vmatprep.subr.mxu0 0.0
  %90 = vmatpush1.msra.mxu0 0.0
  %91 = vmatprep.subr.mxu0 0.0
  %92 = vmatpush1.msra.mxu0 0.0
  %93 = vmatprep.subr.mxu0 0.0
  %94 = vmatpush1.msra.mxu0 0.0
  %95 = vmatprep.subr.mxu0 0.0
  %96 = vmatpush1.msra.mxu0 0.0
  %97 = vmatprep.subr.mxu0 0.0
  %98 = vmatpush1.msra.mxu0 0.0
  %99 = vmatprep.subr.mxu0 0.0
  %100 = vmatpush1.msra.mxu0 0.0
  %101 = vmatprep.subr.mxu0 0.0
  %102 = vmatpush1.msra.mxu0 0.0
  %103 = vmatprep.subr.mxu0 0.0
  %104 = vmatpush1.msra.mxu0 0.0
  %105 = vmatprep.subr.mxu0 0.0
  %106 = vmatpush1.msra.mxu0 0.0
  %107 = vmatprep.subr.mxu0 0.0
  %108 = vmatpush1.msra.mxu0 0.0
  %109 = vmatprep.subr.mxu0 0.0
  %110 = vmatpush1.msra.mxu0 0.0
  %111 = vmatprep.subr.mxu0 0.0
  %112 = vmatpush1.msra.mxu0 0.0
  %113 = vmatprep.subr.mxu0 0.0
  %114 = vmatpush1.msra.mxu0 0.0
  %115 = vmatprep.subr.mxu0 0.0
  %116 = vmatpush1.msra.mxu0 0.0
  %117 = vmatprep.subr.mxu0 0.0
  %118 = vmatpush1.msra.mxu0 0.0
  %119 = vmatprep.subr.mxu0 0.0
  %120 = vmatpush1.msra.mxu0 0.0
  %121 = vmatprep.subr.mxu0 0.0
  %122 = vmatpush1.msra.mxu0 0.0
  %123 = vmatprep.mubr.f32.mxu0 0.0
  %124 = vmatmul.mubr.f32.gmra.mrb[0].mxu0 %v54
  %v125 = vpop.f32.mrb[0].mxu0
  %v126 = vadd.f32 %v50, %v125
  %v127 = vpop.f32.mrb[0].mxu0
  %128 = vmatprep.mubr.f32.mxu0 0.0
  %129 = vmatmul.mubr.f32.gmra.mrb[0].mxu0 %v57
  %v130 = vpop.f32.mrb[0].mxu0
  %v131 = vadd.f32 %v50, %v130
  %v132 = vpop.f32.mrb[0].mxu0
  %133 = vdwg.mxu0
  %v134 = vld [vmem:[%s0] sm:$0xff]
  %v135 = vld [vmem:[%s0 + $0x8] sm:$0xff]
  %v136 = vld [vmem:[%s0 + $0x10] sm:$0xff]
  %v137 = vld [vmem:[%s0 + $0x18] sm:$0xff]
  %v138 = vld [vmem:[%s3] sm:$0x1]
  %140 = vset.pattern.permute.xlu0 0
  %141 = vperm.xlu0 %140, %v134
  %v142 = vpop.permute.xlu0 %141
  %145 = vset.pattern.permute.xlu0 0
  %146 = vperm.xlu0 %145, %v135
  %v147 = vpop.permute.xlu0 %146
  %150 = vset.pattern.permute.xlu0 0
  %151 = vperm.xlu0 %150, %v136
  %v152 = vpop.permute.xlu0 %151
  %155 = vset.pattern.permute.xlu0 0
  %156 = vperm.xlu0 %155, %v137
  %v157 = vpop.permute.xlu0 %156
  %v160 = vlaneseq
  %v161 = vshrl.u32 %v160, 7
  %v162 = vsub.s32 0, %v161
  %v163 = vrot.slane %v138, %v162
  %v165 = vmul.f32 %v142, %v163
  %v166 = vmul.f32 %v147, %v163
  %v167 = vmul.f32 %v152, %v163
  %v168 = vmul.f32 %v157, %v163
  %v169 = vadd.f32 %v165, %v126
  %v170 = vadd.f32 %v166, %v131
  %v171 = vadd.f32 %v167, %v126
  %v172 = vadd.f32 %v168, %v131
  %v173 = vld [vmem:[%s2] sm:$0xff]
  %v174 = vld [vmem:[%s2 + $0x8] sm:$0xff]
  %v175 = vld [vmem:[%s2 + $0x10] sm:$0xff]
  %v176 = vld [vmem:[%s2 + $0x18] sm:$0xff]
  %v177 = vld [vmem:[%s6] sm:$0xff]
  %v178 = vld [vmem:[%s7] sm:$0x1]
  %vm179 = vcmask 64512
  %v181 = vsel %vm179, %v169, 0
  %v184 = vsel %vm179, %v170, 0
  %v187 = vsel %vm179, %v171, 0
  %v190 = vsel %vm179, %v172, 0
  %192 = vmatprep.subr.mxu0 0.0
  %193 = vmatpush1.msra.mxu0 %v177
  %194 = vmatprep.subr.mxu0 0.0
  %195 = vmatpush1.msra.mxu0 0.0
  %196 = vmatprep.subr.mxu0 0.0
  %197 = vmatpush1.msra.mxu0 0.0
  %198 = vmatprep.subr.mxu0 0.0
  %199 = vmatpush1.msra.mxu0 0.0
  %200 = vmatprep.subr.mxu0 0.0
  %201 = vmatpush1.msra.mxu0 0.0
  %202 = vmatprep.subr.mxu0 0.0
  %203 = vmatpush1.msra.mxu0 0.0
  %204 = vmatprep.subr.mxu0 0.0
  %205 = vmatpush1.msra.mxu0 0.0
  %206 = vmatprep.subr.mxu0 0.0
  %207 = vmatpush1.msra.mxu0 0.0
  %208 = vmatprep.subr.mxu0 0.0
  %209 = vmatpush1.msra.mxu0 0.0
  %210 = vmatprep.subr.mxu0 0.0
  %211 = vmatpush1.msra.mxu0 0.0
  %212 = vmatprep.subr.mxu0 0.0
  %213 = vmatpush1.msra.mxu0 0.0
  %214 = vmatprep.subr.mxu0 0.0
  %215 = vmatpush1.msra.mxu0 0.0
  %216 = vmatprep.subr.mxu0 0.0
  %217 = vmatpush1.msra.mxu0 0.0
  %218 = vmatprep.subr.mxu0 0.0
  %219 = vmatpush1.msra.mxu0 0.0
  %220 = vmatprep.subr.mxu0 0.0
  %221 = vmatpush1.msra.mxu0 0.0
  %222 = vmatprep.subr.mxu0 0.0
  %223 = vmatpush1.msra.mxu0 0.0
  %224 = vmatprep.subr.mxu0 0.0
  %225 = vmatpush1.msra.mxu0 0.0
  %226 = vmatprep.subr.mxu0 0.0
  %227 = vmatpush1.msra.mxu0 0.0
  %228 = vmatprep.subr.mxu0 0.0
  %229 = vmatpush1.msra.mxu0 0.0
  %230 = vmatprep.subr.mxu0 0.0
  %231 = vmatpush1.msra.mxu0 0.0
  %232 = vmatprep.subr.mxu0 0.0
  %233 = vmatpush1.msra.mxu0 0.0
  %234 = vmatprep.subr.mxu0 0.0
  %235 = vmatpush1.msra.mxu0 0.0
  %236 = vmatprep.subr.mxu0 0.0
  %237 = vmatpush1.msra.mxu0 0.0
  %238 = vmatprep.subr.mxu0 0.0
  %239 = vmatpush1.msra.mxu0 0.0
  %240 = vmatprep.subr.mxu0 0.0
  %241 = vmatpush1.msra.mxu0 0.0
  %242 = vmatprep.subr.mxu0 0.0
  %243 = vmatpush1.msra.mxu0 0.0
  %244 = vmatprep.subr.mxu0 0.0
  %245 = vmatpush1.msra.mxu0 0.0
  %246 = vmatprep.subr.mxu0 0.0
  %247 = vmatpush1.msra.mxu0 0.0
  %248 = vmatprep.subr.mxu0 0.0
  %249 = vmatpush1.msra.mxu0 0.0
  %250 = vmatprep.subr.mxu0 0.0
  %251 = vmatpush1.msra.mxu0 0.0
  %252 = vmatprep.subr.mxu0 0.0
  %253 = vmatpush1.msra.mxu0 0.0
  %254 = vmatprep.subr.mxu0 0.0
  %255 = vmatpush1.msra.mxu0 0.0
  %256 = vmatprep.mubr.f32.mxu0 0.0
  %257 = vmatmul.mubr.f32.gmra.mrb[0].mxu0 %v181
  %v258 = vpop.f32.mrb[0].mxu0
  %v259 = vadd.f32 0.0, %v258
  %v260 = vpop.f32.mrb[0].mxu0
  %261 = vmatprep.mubr.f32.mxu0 0.0
  %262 = vmatmul.mubr.f32.gmra.mrb[0].mxu0 %v184
  %v263 = vpop.f32.mrb[0].mxu0
  %v264 = vadd.f32 0.0, %v263
  %v265 = vpop.f32.mrb[0].mxu0
  %266 = vmatprep.mubr.f32.mxu0 0.0
  %267 = vmatmul.mubr.f32.gmra.mrb[0].mxu0 %v187
  %v268 = vpop.f32.mrb[0].mxu0
  %v269 = vadd.f32 0.0, %v268
  %v270 = vpop.f32.mrb[0].mxu0
  %271 = vmatprep.mubr.f32.mxu0 0.0
  %272 = vmatmul.mubr.f32.gmra.mrb[0].mxu0 %v190
  %v273 = vpop.f32.mrb[0].mxu0
  %v274 = vadd.f32 0.0, %v273
  %v275 = vpop.f32.mrb[0].mxu0
  %276 = vdwg.mxu0
  %v278 = vlaneseq
  %v279 = vshrl.u32 %v278, 7
  %v280 = vsub.s32 0, %v279
  %v281 = vrot.slane %v178, %v280
  %vm283 = vcmask 261120
  %v285 = vsel %vm283, %v173, 0
  %v288 = vsel %vm283, %v174, 0
  %v291 = vsel %vm283, %v175, 0
  %v294 = vsel %vm283, %v176, 0
  %296 = vmatprep.subr.mxu0 0.0
  %297 = vmatpush1.msra.mxu0 %v259
  %298 = vmatprep.subr.mxu0 0.0
  %299 = vmatpush1.msra.mxu0 %v264
  %300 = vmatprep.subr.mxu0 0.0
  %301 = vmatpush1.msra.mxu0 %v269
  %302 = vmatprep.subr.mxu0 0.0
  %303 = vmatpush1.msra.mxu0 %v274
  %304 = vmatprep.subr.mxu0 0.0
  %305 = vmatpush1.msra.mxu0 0.0
  %306 = vmatprep.subr.mxu0 0.0
  %307 = vmatpush1.msra.mxu0 0.0
  %308 = vmatprep.subr.mxu0 0.0
  %309 = vmatpush1.msra.mxu0 0.0
  %310 = vmatprep.subr.mxu0 0.0
  %311 = vmatpush1.msra.mxu0 0.0
  %312 = vmatprep.subr.mxu0 0.0
  %313 = vmatpush1.msra.mxu0 0.0
  %314 = vmatprep.subr.mxu0 0.0
  %315 = vmatpush1.msra.mxu0 0.0
  %316 = vmatprep.subr.mxu0 0.0
  %317 = vmatpush1.msra.mxu0 0.0
  %318 = vmatprep.subr.mxu0 0.0
  %319 = vmatpush1.msra.mxu0 0.0
  %320 = vmatprep.subr.mxu0 0.0
  %321 = vmatpush1.msra.mxu0 0.0
  %322 = vmatprep.subr.mxu0 0.0
  %323 = vmatpush1.msra.mxu0 0.0
  %324 = vmatprep.subr.mxu0 0.0
  %325 = vmatpush1.msra.mxu0 0.0
  %326 = vmatprep.subr.mxu0 0.0
  %327 = vmatpush1.msra.mxu0 0.0
  %328 = vmatprep.subr.mxu0 0.0
  %329 = vmatpush1.msra.mxu0 0.0
  %330 = vmatprep.subr.mxu0 0.0
  %331 = vmatpush1.msra.mxu0 0.0
  %332 = vmatprep.subr.mxu0 0.0
  %333 = vmatpush1.msra.mxu0 0.0
  %334 = vmatprep.subr.mxu0 0.0
  %335 = vmatpush1.msra.mxu0 0.0
  %336 = vmatprep.subr.mxu0 0.0
  %337 = vmatpush1.msra.mxu0 0.0
  %338 = vmatprep.subr.mxu0 0.0
  %339 = vmatpush1.msra.mxu0 0.0
  %340 = vmatprep.subr.mxu0 0.0
  %341 = vmatpush1.msra.mxu0 0.0
  %342 = vmatprep.subr.mxu0 0.0
  %343 = vmatpush1.msra.mxu0 0.0
  %344 = vmatprep.subr.mxu0 0.0
  %345 = vmatpush1.msra.mxu0 0.0
  %346 = vmatprep.subr.mxu0 0.0
  %347 = vmatpush1.msra.mxu0 0.0
  %348 = vmatprep.subr.mxu0 0.0
  %349 = vmatpush1.msra.mxu0 0.0
  %350 = vmatprep.subr.mxu0 0.0
  %351 = vmatpush1.msra.mxu0 0.0
  %352 = vmatprep.subr.mxu0 0.0
  %353 = vmatpush1.msra.mxu0 0.0
  %354 = vmatprep.subr.mxu0 0.0
  %355 = vmatpush1.msra.mxu0 0.0
  %356 = vmatprep.subr.mxu0 0.0
  %357 = vmatpush1.msra.mxu0 0.0
  %358 = vmatprep.subr.mxu0 0.0
  %359 = vmatpush1.msra.mxu0 0.0
  %360 = vmatprep.mubr.f32.mxu0 0.0
  %361 = vmatmul.mubr.f32.gmra.mrb[0].mxu0 %v285
  %v362 = vpop.f32.mrb[0].mxu0
  %v363 = vadd.f32 %v281, %v362
  %v364 = vpop.f32.mrb[0].mxu0
  %365 = vmatprep.mubr.f32.mxu0 0.0
  %366 = vmatmul.mubr.f32.gmra.mrb[0].mxu0 %v288
  %v367 = vpop.f32.mrb[0].mxu0
  %v368 = vadd.f32 %v281, %v367
  %v369 = vpop.f32.mrb[0].mxu0
  %370 = vmatprep.mubr.f32.mxu0 0.0
  %371 = vmatmul.mubr.f32.gmra.mrb[0].mxu0 %v291
  %v372 = vpop.f32.mrb[0].mxu0
  %v373 = vadd.f32 %v281, %v372
  %v374 = vpop.f32.mrb[0].mxu0
  %375 = vmatprep.mubr.f32.mxu0 0.0
  %376 = vmatmul.mubr.f32.gmra.mrb[0].mxu0 %v294
  %v377 = vpop.f32.mrb[0].mxu0
  %v378 = vadd.f32 %v281, %v377
  %v379 = vpop.f32.mrb[0].mxu0
  %380 = vdwg.mxu0
  %v381 = vld [vmem:[%s8] sm:$0xff]
  %v382 = vld [vmem:[%s8 + $0x8] sm:$0xff]
  %v383 = vld [vmem:[%s8 + $0x10] sm:$0xff]
  %v384 = vld [vmem:[%s8 + $0x18] sm:$0xff]
  %v385 = vld [vmem:[%s8 + $0x20] sm:$0xff]
  %v386 = vld [vmem:[%s8 + $0x28] sm:$0xff]
  %v387 = vld [vmem:[%s8 + $0x30] sm:$0xff]
  %v388 = vld [vmem:[%s8 + $0x38] sm:$0xff]
  %v389 = vld [vmem:[%s8 + $0x40] sm:$0xff]
  %v390 = vld [vmem:[%s8 + $0x48] sm:$0xff]
  %v391 = vld [vmem:[%s8 + $0x50] sm:$0xff]
  %v392 = vld [vmem:[%s8 + $0x58] sm:$0xff]
  %v393 = vld [vmem:[%s8 + $0x60] sm:$0xff]
  %v394 = vld [vmem:[%s8 + $0x68] sm:$0xff]
  %v395 = vld [vmem:[%s8 + $0x70] sm:$0xff]
  %v396 = vld [vmem:[%s8 + $0x78] sm:$0xff]
  %v397 = vld [vmem:[%s9] sm:$0x1]
  %398 = vmatprep.subr.mxu0 0.0
  %399 = vmatpush1.msra.mxu0 %v381
  %400 = vmatprep.subr.mxu0 0.0
  %401 = vmatpush1.msra.mxu0 %v382
  %402 = vmatprep.subr.mxu0 0.0
  %403 = vmatpush1.msra.mxu0 %v383
  %404 = vmatprep.subr.mxu0 0.0
  %405 = vmatpush1.msra.mxu0 %v384
  %406 = vmatprep.subr.mxu0 0.0
  %407 = vmatpush1.msra.mxu0 %v385
  %408 = vmatprep.subr.mxu0 0.0
  %409 = vmatpush1.msra.mxu0 %v386
  %410 = vmatprep.subr.mxu0 0.0
  %411 = vmatpush1.msra.mxu0 %v387
  %412 = vmatprep.subr.mxu0 0.0
  %413 = vmatpush1.msra.mxu0 %v388
  %414 = vmatprep.subr.mxu0 0.0
  %415 = vmatpush1.msra.mxu0 %v389
  %416 = vmatprep.subr.mxu0 0.0
  %417 = vmatpush1.msra.mxu0 %v390
  %418 = vmatprep.subr.mxu0 0.0
  %419 = vmatpush1.msra.mxu0 %v391
  %420 = vmatprep.subr.mxu0 0.0
  %421 = vmatpush1.msra.mxu0 %v392
  %422 = vmatprep.subr.mxu0 0.0
  %423 = vmatpush1.msra.mxu0 %v393
  %424 = vmatprep.subr.mxu0 0.0
  %425 = vmatpush1.msra.mxu0 %v394
  %426 = vmatprep.subr.mxu0 0.0
  %427 = vmatpush1.msra.mxu0 %v395
  %428 = vmatprep.subr.mxu0 0.0
  %429 = vmatpush1.msra.mxu0 %v396
  %430 = vmatprep.subr.mxu0 0.0
  %431 = vmatpush1.msra.mxu0 0.0
  %432 = vmatprep.subr.mxu0 0.0
  %433 = vmatpush1.msra.mxu0 0.0
  %434 = vmatprep.subr.mxu0 0.0
  %435 = vmatpush1.msra.mxu0 0.0
  %436 = vmatprep.subr.mxu0 0.0
  %437 = vmatpush1.msra.mxu0 0.0
  %438 = vmatprep.subr.mxu0 0.0
  %439 = vmatpush1.msra.mxu0 0.0
  %440 = vmatprep.subr.mxu0 0.0
  %441 = vmatpush1.msra.mxu0 0.0
  %442 = vmatprep.subr.mxu0 0.0
  %443 = vmatpush1.msra.mxu0 0.0
  %444 = vmatprep.subr.mxu0 0.0
  %445 = vmatpush1.msra.mxu0 0.0
  %446 = vmatprep.subr.mxu0 0.0
  %447 = vmatpush1.msra.mxu0 0.0
  %448 = vmatprep.subr.mxu0 0.0
  %449 = vmatpush1.msra.mxu0 0.0
  %450 = vmatprep.subr.mxu0 0.0
  %451 = vmatpush1.msra.mxu0 0.0
  %452 = vmatprep.subr.mxu0 0.0
  %453 = vmatpush1.msra.mxu0 0.0
  %454 = vmatprep.subr.mxu0 0.0
  %455 = vmatpush1.msra.mxu0 0.0
  %456 = vmatprep.subr.mxu0 0.0
  %457 = vmatpush1.msra.mxu0 0.0
  %458 = vmatprep.subr.mxu0 0.0
  %459 = vmatpush1.msra.mxu0 0.0
  %460 = vmatprep.subr.mxu0 0.0
  %461 = vmatpush1.msra.mxu0 0.0
  %462 = vmatprep.mubr.f32.mxu0 0.0
  %463 = vmatmul.mubr.f32.gmra.mrb[0].mxu0 %v363
  %v464 = vpop.f32.mrb[0].mxu0
  %v465 = vadd.f32 0.0, %v464
  %v466 = vpop.f32.mrb[0].mxu0
  %467 = vmatprep.mubr.f32.mxu0 0.0
  %468 = vmatmul.mubr.f32.gmra.mrb[0].mxu0 %v368
  %v469 = vpop.f32.mrb[0].mxu0
  %v470 = vadd.f32 0.0, %v469
  %v471 = vpop.f32.mrb[0].mxu0
  %472 = vmatprep.mubr.f32.mxu0 0.0
  %473 = vmatmul.mubr.f32.gmra.mrb[0].mxu0 %v373
  %v474 = vpop.f32.mrb[0].mxu0
  %v475 = vadd.f32 0.0, %v474
  %v476 = vpop.f32.mrb[0].mxu0
  %477 = vmatprep.mubr.f32.mxu0 0.0
  %478 = vmatmul.mubr.f32.gmra.mrb[0].mxu0 %v378
  %v479 = vpop.f32.mrb[0].mxu0
  %v480 = vadd.f32 0.0, %v479
  %v481 = vpop.f32.mrb[0].mxu0
  %482 = vdwg.mxu0
  %v484 = vlaneseq
  %v485 = vshrl.u32 %v484, 7
  %v486 = vsub.s32 0, %v485
  %v487 = vrot.slane %v397, %v486
  %489 = vmatprep.subr.mxu0 0.0
  %490 = vmatpush1.msra.mxu0 %v465
  %491 = vmatprep.subr.mxu0 0.0
  %492 = vmatpush1.msra.mxu0 %v470
  %493 = vmatprep.subr.mxu0 0.0
  %494 = vmatpush1.msra.mxu0 %v475
  %495 = vmatprep.subr.mxu0 0.0
  %496 = vmatpush1.msra.mxu0 %v480
  %497 = vmatprep.subr.mxu0 0.0
  %498 = vmatpush1.msra.mxu0 0.0
  %499 = vmatprep.subr.mxu0 0.0
  %500 = vmatpush1.msra.mxu0 0.0
  %501 = vmatprep.subr.mxu0 0.0
  %502 = vmatpush1.msra.mxu0 0.0
  %503 = vmatprep.subr.mxu0 0.0
  %504 = vmatpush1.msra.mxu0 0.0
  %505 = vmatprep.subr.mxu0 0.0
  %506 = vmatpush1.msra.mxu0 0.0
  %507 = vmatprep.subr.mxu0 0.0
  %508 = vmatpush1.msra.mxu0 0.0
  %509 = vmatprep.subr.mxu0 0.0
  %510 = vmatpush1.msra.mxu0 0.0
  %511 = vmatprep.subr.mxu0 0.0
  %512 = vmatpush1.msra.mxu0 0.0
  %513 = vmatprep.subr.mxu0 0.0
  %514 = vmatpush1.msra.mxu0 0.0
  %515 = vmatprep.subr.mxu0 0.0
  %516 = vmatpush1.msra.mxu0 0.0
  %517 = vmatprep.subr.mxu0 0.0
  %518 = vmatpush1.msra.mxu0 0.0
  %519 = vmatprep.subr.mxu0 0.0
  %520 = vmatpush1.msra.mxu0 0.0
  %521 = vmatprep.subr.mxu0 0.0
  %522 = vmatpush1.msra.mxu0 0.0
  %523 = vmatprep.subr.mxu0 0.0
  %524 = vmatpush1.msra.mxu0 0.0
  %525 = vmatprep.subr.mxu0 0.0
  %526 = vmatpush1.msra.mxu0 0.0
  %527 = vmatprep.subr.mxu0 0.0
  %528 = vmatpush1.msra.mxu0 0.0
  %529 = vmatprep.subr.mxu0 0.0
  %530 = vmatpush1.msra.mxu0 0.0
  %531 = vmatprep.subr.mxu0 0.0
  %532 = vmatpush1.msra.mxu0 0.0
  %533 = vmatprep.subr.mxu0 0.0
  %534 = vmatpush1.msra.mxu0 0.0
  %535 = vmatprep.subr.mxu0 0.0
  %536 = vmatpush1.msra.mxu0 0.0
  %537 = vmatprep.subr.mxu0 0.0
  %538 = vmatpush1.msra.mxu0 0.0
  %539 = vmatprep.subr.mxu0 0.0
  %540 = vmatpush1.msra.mxu0 0.0
  %541 = vmatprep.subr.mxu0 0.0
  %542 = vmatpush1.msra.mxu0 0.0
  %543 = vmatprep.subr.mxu0 0.0
  %544 = vmatpush1.msra.mxu0 0.0
  %545 = vmatprep.subr.mxu0 0.0
  %546 = vmatpush1.msra.mxu0 0.0
  %547 = vmatprep.subr.mxu0 0.0
  %548 = vmatpush1.msra.mxu0 0.0
  %549 = vmatprep.subr.mxu0 0.0
  %550 = vmatpush1.msra.mxu0 0.0
  %551 = vmatprep.subr.mxu0 0.0
  %552 = vmatpush1.msra.mxu0 0.0
  %553 = vmatprep.mubr.f32.mxu0 0.0
  %554 = vmatmul.mubr.f32.gmra.mrb[0].mxu0 %v285
  %v555 = vpop.f32.mrb[0].mxu0
  %v556 = vadd.f32 %v487, %v555
  %v557 = vpop.f32.mrb[0].mxu0
  %558 = vmatprep.mubr.f32.mxu0 0.0
  %559 = vmatmul.mubr.f32.gmra.mrb[0].mxu0 %v288
  %v560 = vpop.f32.mrb[0].mxu0
  %v561 = vadd.f32 %v487, %v560
  %v562 = vpop.f32.mrb[0].mxu0
  %563 = vmatprep.mubr.f32.mxu0 0.0
  %564 = vmatmul.mubr.f32.gmra.mrb[0].mxu0 %v291
  %v565 = vpop.f32.mrb[0].mxu0
  %v566 = vadd.f32 %v487, %v565
  %v567 = vpop.f32.mrb[0].mxu0
  %568 = vmatprep.mubr.f32.mxu0 0.0
  %569 = vmatmul.mubr.f32.gmra.mrb[0].mxu0 %v294
  %v570 = vpop.f32.mrb[0].mxu0
  %v571 = vadd.f32 %v487, %v570
  %v572 = vpop.f32.mrb[0].mxu0
  %573 = vdwg.mxu0
  %v574 = vld [vmem:[%s10] sm:$0xff]
  %v575 = vld [vmem:[%s10 + $0x8] sm:$0xff]
  %v576 = vld [vmem:[%s10 + $0x10] sm:$0xff]
  %v577 = vld [vmem:[%s10 + $0x18] sm:$0xff]
  %v578 = vld [vmem:[%s10 + $0x20] sm:$0xff]
  %v579 = vld [vmem:[%s10 + $0x28] sm:$0xff]
  %v580 = vld [vmem:[%s10 + $0x30] sm:$0xff]
  %v581 = vld [vmem:[%s10 + $0x38] sm:$0xff]
  %v582 = vld [vmem:[%s10 + $0x40] sm:$0xff]
  %v583 = vld [vmem:[%s10 + $0x48] sm:$0xff]
  %v584 = vld [vmem:[%s10 + $0x50] sm:$0xff]
  %v585 = vld [vmem:[%s10 + $0x58] sm:$0xff]
  %v586 = vld [vmem:[%s10 + $0x60] sm:$0xff]
  %v587 = vld [vmem:[%s10 + $0x68] sm:$0xff]
  %v588 = vld [vmem:[%s10 + $0x70] sm:$0xff]
  %v589 = vld [vmem:[%s10 + $0x78] sm:$0xff]
  %v590 = vld [vmem:[%s11] sm:$0x1]
  %591 = vmatprep.subr.mxu0 0.0
  %592 = vmatpush1.msra.mxu0 %v574
  %593 = vmatprep.subr.mxu0 0.0
  %594 = vmatpush1.msra.mxu0 %v575
  %595 = vmatprep.subr.mxu0 0.0
  %596 = vmatpush1.msra.mxu0 %v576
  %597 = vmatprep.subr.mxu0 0.0
  %598 = vmatpush1.msra.mxu0 %v577
  %599 = vmatprep.subr.mxu0 0.0
  %600 = vmatpush1.msra.mxu0 %v578
  %601 = vmatprep.subr.mxu0 0.0
  %602 = vmatpush1.msra.mxu0 %v579
  %603 = vmatprep.subr.mxu0 0.0
  %604 = vmatpush1.msra.mxu0 %v580
  %605 = vmatprep.subr.mxu0 0.0
  %606 = vmatpush1.msra.mxu0 %v581
  %607 = vmatprep.subr.mxu0 0.0
  %608 = vmatpush1.msra.mxu0 %v582
  %609 = vmatprep.subr.mxu0 0.0
  %610 = vmatpush1.msra.mxu0 %v583
  %611 = vmatprep.subr.mxu0 0.0
  %612 = vmatpush1.msra.mxu0 %v584
  %613 = vmatprep.subr.mxu0 0.0
  %614 = vmatpush1.msra.mxu0 %v585
  %615 = vmatprep.subr.mxu0 0.0
  %616 = vmatpush1.msra.mxu0 %v586
  %617 = vmatprep.subr.mxu0 0.0
  %618 = vmatpush1.msra.mxu0 %v587
  %619 = vmatprep.subr.mxu0 0.0
  %620 = vmatpush1.msra.mxu0 %v588
  %621 = vmatprep.subr.mxu0 0.0
  %622 = vmatpush1.msra.mxu0 %v589
  %623 = vmatprep.subr.mxu0 0.0
  %624 = vmatpush1.msra.mxu0 0.0
  %625 = vmatprep.subr.mxu0 0.0
  %626 = vmatpush1.msra.mxu0 0.0
  %627 = vmatprep.subr.mxu0 0.0
  %628 = vmatpush1.msra.mxu0 0.0
  %629 = vmatprep.subr.mxu0 0.0
  %630 = vmatpush1.msra.mxu0 0.0
  %631 = vmatprep.subr.mxu0 0.0
  %632 = vmatpush1.msra.mxu0 0.0
  %633 = vmatprep.subr.mxu0 0.0
  %634 = vmatpush1.msra.mxu0 0.0
  %635 = vmatprep.subr.mxu0 0.0
  %636 = vmatpush1.msra.mxu0 0.0
  %637 = vmatprep.subr.mxu0 0.0
  %638 = vmatpush1.msra.mxu0 0.0
  %639 = vmatprep.subr.mxu0 0.0
  %640 = vmatpush1.msra.mxu0 0.0
  %641 = vmatprep.subr.mxu0 0.0
  %642 = vmatpush1.msra.mxu0 0.0
  %643 = vmatprep.subr.mxu0 0.0
  %644 = vmatpush1.msra.mxu0 0.0
  %645 = vmatprep.subr.mxu0 0.0
  %646 = vmatpush1.msra.mxu0 0.0
  %647 = vmatprep.subr.mxu0 0.0
  %648 = vmatpush1.msra.mxu0 0.0
  %649 = vmatprep.subr.mxu0 0.0
  %650 = vmatpush1.msra.mxu0 0.0
  %651 = vmatprep.subr.mxu0 0.0
  %652 = vmatpush1.msra.mxu0 0.0
  %653 = vmatprep.subr.mxu0 0.0
  %654 = vmatpush1.msra.mxu0 0.0
  %655 = vmatprep.mubr.f32.mxu0 0.0
  %656 = vmatmul.mubr.f32.gmra.mrb[0].mxu0 %v556
  %v657 = vpop.f32.mrb[0].mxu0
  %v658 = vadd.f32 0.0, %v657
  %v659 = vpop.f32.mrb[0].mxu0
  %660 = vmatprep.mubr.f32.mxu0 0.0
  %661 = vmatmul.mubr.f32.gmra.mrb[0].mxu0 %v561
  %v662 = vpop.f32.mrb[0].mxu0
  %v663 = vadd.f32 0.0, %v662
  %v664 = vpop.f32.mrb[0].mxu0
  %665 = vmatprep.mubr.f32.mxu0 0.0
  %666 = vmatmul.mubr.f32.gmra.mrb[0].mxu0 %v566
  %v667 = vpop.f32.mrb[0].mxu0
  %v668 = vadd.f32 0.0, %v667
  %v669 = vpop.f32.mrb[0].mxu0
  %670 = vmatprep.mubr.f32.mxu0 0.0
  %671 = vmatmul.mubr.f32.gmra.mrb[0].mxu0 %v571
  %v672 = vpop.f32.mrb[0].mxu0
  %v673 = vadd.f32 0.0, %v672
  %v674 = vpop.f32.mrb[0].mxu0
  %675 = vdwg.mxu0
  %v677 = vlaneseq
  %v678 = vshrl.u32 %v677, 7
  %v679 = vsub.s32 0, %v678
  %v680 = vrot.slane %v590, %v679
  %682 = vmatprep.subr.mxu0 0.0
  %683 = vmatpush1.msra.mxu0 %v658
  %684 = vmatprep.subr.mxu0 0.0
  %685 = vmatpush1.msra.mxu0 %v663
  %686 = vmatprep.subr.mxu0 0.0
  %687 = vmatpush1.msra.mxu0 %v668
  %688 = vmatprep.subr.mxu0 0.0
  %689 = vmatpush1.msra.mxu0 %v673
  %690 = vmatprep.subr.mxu0 0.0
  %691 = vmatpush1.msra.mxu0 0.0
  %692 = vmatprep.subr.mxu0 0.0
  %693 = vmatpush1.msra.mxu0 0.0
  %694 = vmatprep.subr.mxu0 0.0
  %695 = vmatpush1.msra.mxu0 0.0
  %696 = vmatprep.subr.mxu0 0.0
  %697 = vmatpush1.msra.mxu0 0.0
  %698 = vmatprep.subr.mxu0 0.0
  %699 = vmatpush1.msra.mxu0 0.0
  %700 = vmatprep.subr.mxu0 0.0
  %701 = vmatpush1.msra.mxu0 0.0
  %702 = vmatprep.subr.mxu0 0.0
  %703 = vmatpush1.msra.mxu0 0.0
  %704 = vmatprep.subr.mxu0 0.0
  %705 = vmatpush1.msra.mxu0 0.0
  %706 = vmatprep.subr.mxu0 0.0
  %707 = vmatpush1.msra.mxu0 0.0
  %708 = vmatprep.subr.mxu0 0.0
  %709 = vmatpush1.msra.mxu0 0.0
  %710 = vmatprep.subr.mxu0 0.0
  %711 = vmatpush1.msra.mxu0 0.0
  %712 = vmatprep.subr.mxu0 0.0
  %713 = vmatpush1.msra.mxu0 0.0
  %714 = vmatprep.subr.mxu0 0.0
  %715 = vmatpush1.msra.mxu0 0.0
  %716 = vmatprep.subr.mxu0 0.0
  %717 = vmatpush1.msra.mxu0 0.0
  %718 = vmatprep.subr.mxu0 0.0
  %719 = vmatpush1.msra.mxu0 0.0
  %720 = vmatprep.subr.mxu0 0.0
  %721 = vmatpush1.msra.mxu0 0.0
  %722 = vmatprep.subr.mxu0 0.0
  %723 = vmatpush1.msra.mxu0 0.0
  %724 = vmatprep.subr.mxu0 0.0
  %725 = vmatpush1.msra.mxu0 0.0
  %726 = vmatprep.subr.mxu0 0.0
  %727 = vmatpush1.msra.mxu0 0.0
  %728 = vmatprep.subr.mxu0 0.0
  %729 = vmatpush1.msra.mxu0 0.0
  %730 = vmatprep.subr.mxu0 0.0
  %731 = vmatpush1.msra.mxu0 0.0
  %732 = vmatprep.subr.mxu0 0.0
  %733 = vmatpush1.msra.mxu0 0.0
  %734 = vmatprep.subr.mxu0 0.0
  %735 = vmatpush1.msra.mxu0 0.0
  %736 = vmatprep.subr.mxu0 0.0
  %737 = vmatpush1.msra.mxu0 0.0
  %738 = vmatprep.subr.mxu0 0.0
  %739 = vmatpush1.msra.mxu0 0.0
  %740 = vmatprep.subr.mxu0 0.0
  %741 = vmatpush1.msra.mxu0 0.0
  %742 = vmatprep.subr.mxu0 0.0
  %743 = vmatpush1.msra.mxu0 0.0
  %744 = vmatprep.subr.mxu0 0.0
  %745 = vmatpush1.msra.mxu0 0.0
  %746 = vmatprep.mubr.f32.mxu0 0.0
  %747 = vmatmul.mubr.f32.gmra.mrb[0].mxu0 %v285
  %v748 = vpop.f32.mrb[0].mxu0
  %v749 = vadd.f32 %v680, %v748
  %v750 = vpop.f32.mrb[0].mxu0
  %751 = vmatprep.mubr.f32.mxu0 0.0
  %752 = vmatmul.mubr.f32.gmra.mrb[0].mxu0 %v288
  %v753 = vpop.f32.mrb[0].mxu0
  %v754 = vadd.f32 %v680, %v753
  %v755 = vpop.f32.mrb[0].mxu0
  %756 = vmatprep.mubr.f32.mxu0 0.0
  %757 = vmatmul.mubr.f32.gmra.mrb[0].mxu0 %v291
  %v758 = vpop.f32.mrb[0].mxu0
  %v759 = vadd.f32 %v680, %v758
  %v760 = vpop.f32.mrb[0].mxu0
  %761 = vmatprep.mubr.f32.mxu0 0.0
  %762 = vmatmul.mubr.f32.gmra.mrb[0].mxu0 %v294
  %v763 = vpop.f32.mrb[0].mxu0
  %v764 = vadd.f32 %v680, %v763
  %v765 = vpop.f32.mrb[0].mxu0
  %766 = vdwg.mxu0
  %767 = vst [vmem:[%s12] sm:$0xff] %v749
  %768 = vst [vmem:[%s12 + $0x8] sm:$0xff] %v754
  %769 = vst [vmem:[%s12 + $0x10] sm:$0xff] %v759
  %770 = vst [vmem:[%s12 + $0x18] sm:$0xff] %v764
  // Predicated region
  $region50: #{gnn_forward.2} parent=0 // pred_check
    _
  $region51: #{gnn_forward.2} parent=0 // pred_check_branch
    %772 = sbr.rel (0) target = $region53
  $region52: #{gnn_forward.2} parent=0 // pred_region
    _
  $region53: #{gnn_forward.2} parent=0 // pred_fallthru
    _
  // Predicated region
  $region54: #{gnn_forward.2} parent=0 // pred_check
    _
  $region55: #{gnn_forward.2} parent=0 // pred_check_branch
    %774 = sbr.rel (0) target = $region57
  $region56: #{gnn_forward.2} parent=0 // pred_region
    _
  $region57: #{gnn_forward.2} parent=0 // pred_fallthru
    _

// kernel: gnn_forward.3
$region0: #{gnn_forward.3}
  #allocation0 [shape = 'u32[]', space=smem, size = 0x4, offset = 0x4, fixed_abs, tag = 'smem constant byte address 0x4 - core index']
  #allocation1 [shape = 'u32[144,128]{1,0:T(1,128)}', space=vmem, size = 0x12000, scoped, tag = 'internal scratch']
  %s0 = inlined_call_operand.vmem [shape: f32[2,2048], index: 0, kind: input, shape index: {}]
  %s1 = inlined_call_operand.vmem [shape: f32[2048,32], index: 1, kind: input, shape index: {}]
  %s2 = inlined_call_operand.vmem [shape: f32[1,32], index: 2, kind: input, shape index: {}]
  %s3 = inlined_call_operand.vmem [shape: f32[1,32], index: 3, kind: input, shape index: {}]
  %s4 = inlined_call_operand.vmem [shape: f32[1,32], index: 4, kind: input, shape index: {}]
  %s5 = inlined_call_operand.vmem [shape: f32[1,32], index: 5, kind: input, shape index: {}]
  %s6 = inlined_call_operand.vmem [shape: f32[1,32], index: 6, kind: input, shape index: {}]
  %s7 = inlined_call_operand.vmem [shape: f32[32,128], index: 7, kind: input, shape index: {}]
  %s8 = inlined_call_operand.vmem [shape: f32[1,128], index: 8, kind: input, shape index: {}]
  %s9 = inlined_call_operand.hbm [shape: f32[2,128], index: 9, kind: output, shape index: {}]
  %s10 = sld [smem:[#allocation0]]
  $region46: #{gnn_forward.3} parent=0
    _
  %s12 = ssub.s32 1, %s10
  %s13 = scalar_select 0, %s12, %s10
  $region1: #{gnn_forward.3} parent=0
    #allocation2 [shape = 'u8[1024]{0}', space=vmem, size = 0x400, scoped, tag = 'output window, operand 0, single buffered']
    #allocation3 [shape = 's32[1]{0}', space=sflag, size = 0x4, scoped, tag = 'scoped memory for gnn_forward.3']
    %14 = vsyncpa [#allocation3], 0
    // Predicated region
    $region2: #{gnn_forward.3} parent=1 // pred_check
      _
    $region3: #{gnn_forward.3} parent=1 // pred_check_branch
      %16 = sbr.rel (0) target = $region5
    $region4: #{gnn_forward.3} parent=1 // pred_region
      _
    $region5: #{gnn_forward.3} parent=1 // pred_fallthru
      _
    // Predicated region
    $region6: #{gnn_forward.3} parent=1 // pred_check
      _
    $region7: #{gnn_forward.3} parent=1 // pred_check_branch
      %18 = sbr.rel (0) target = $region9
    $region8: #{gnn_forward.3} parent=1 // pred_region
      _
    $region9: #{gnn_forward.3} parent=1 // pred_fallthru
      _
    // Predicated region
    $region10: #{gnn_forward.3} parent=1 // pred_check
      _
    $region11: #{gnn_forward.3} parent=1 // pred_check_branch
      %20 = sbr.rel (0) target = $region13
    $region12: #{gnn_forward.3} parent=1 // pred_region
      _
    $region13: #{gnn_forward.3} parent=1 // pred_fallthru
      _
    // Predicated region
    $region14: #{gnn_forward.3} parent=1 // pred_check
      _
    $region15: #{gnn_forward.3} parent=1 // pred_check_branch
      %22 = sbr.rel (0) target = $region17
    $region16: #{gnn_forward.3} parent=1 // pred_region
      _
    $region17: #{gnn_forward.3} parent=1 // pred_fallthru
      _
    // Predicated region
    $region18: #{gnn_forward.3} parent=1 // pred_check
      _
    $region19: #{gnn_forward.3} parent=1 // pred_check_branch
      %24 = sbr.rel (0) target = $region21
    $region20: #{gnn_forward.3} parent=1 // pred_region
      _
    $region21: #{gnn_forward.3} parent=1 // pred_fallthru
      _
    // Predicated region
    $region22: #{gnn_forward.3} parent=1 // pred_check
      _
    $region23: #{gnn_forward.3} parent=1 // pred_check_branch
      %26 = sbr.rel (0) target = $region25
    $region24: #{gnn_forward.3} parent=1 // pred_region
      _
    $region25: #{gnn_forward.3} parent=1 // pred_fallthru
      _
    // Predicated region
    $region26: #{gnn_forward.3} parent=1 // pred_check
      _
    $region27: #{gnn_forward.3} parent=1 // pred_check_branch
      %28 = sbr.rel (0) target = $region29
    $region28: #{gnn_forward.3} parent=1 // pred_region
      _
    $region29: #{gnn_forward.3} parent=1 // pred_fallthru
      _
    // Predicated region
    $region30: #{gnn_forward.3} parent=1 // pred_check
      _
    $region31: #{gnn_forward.3} parent=1 // pred_check_branch
      %30 = sbr.rel (0) target = $region33
    $region32: #{gnn_forward.3} parent=1 // pred_region
      _
    $region33: #{gnn_forward.3} parent=1 // pred_fallthru
      _
    // Predicated region
    $region34: #{gnn_forward.3} parent=1 // pred_check
      _
    $region35: #{gnn_forward.3} parent=1 // pred_check_branch
      %32 = sbr.rel (0) target = $region37
    $region36: #{gnn_forward.3} parent=1 // pred_region
      _
    $region37: #{gnn_forward.3} parent=1 // pred_fallthru
      _
    %v33 = vld [vmem:[%s0] sm:$0xff]
    %v34 = vld [vmem:[%s0 + $0x8] sm:$0xff]
    %v35 = vld [vmem:[%s0 + $0x10] sm:$0xff]
    %v36 = vld [vmem:[%s0 + $0x18] sm:$0xff]
    %v37 = vld [vmem:[%s1] sm:$0xff]
    %v38 = vld [vmem:[%s1 + $0x8] sm:$0xff]
    %v39 = vld [vmem:[%s1 + $0x10] sm:$0xff]
    %v40 = vld [vmem:[%s1 + $0x18] sm:$0xff]
    %v41 = vld [vmem:[%s1 + $0x20] sm:$0xff]
    %v42 = vld [vmem:[%s1 + $0x28] sm:$0xff]
    %v43 = vld [vmem:[%s1 + $0x30] sm:$0xff]
    %v44 = vld [vmem:[%s1 + $0x38] sm:$0xff]
    %v45 = vld [vmem:[%s1 + $0x40] sm:$0xff]
    %v46 = vld [vmem:[%s1 + $0x48] sm:$0xff]
    %v47 = vld [vmem:[%s1 + $0x50] sm:$0xff]
    %v48 = vld [vmem:[%s1 + $0x58] sm:$0xff]
    %v49 = vld [vmem:[%s1 + $0x60] sm:$0xff]
    %v50 = vld [vmem:[%s1 + $0x68] sm:$0xff]
    %v51 = vld [vmem:[%s1 + $0x70] sm:$0xff]
    %v52 = vld [vmem:[%s1 + $0x78] sm:$0xff]
    %v53 = vld [vmem:[%s1 + $0x80] sm:$0xff]
    %v54 = vld [vmem:[%s1 + $0x88] sm:$0xff]
    %v55 = vld [vmem:[%s1 + $0x90] sm:$0xff]
    %v56 = vld [vmem:[%s1 + $0x98] sm:$0xff]
    %v57 = vld [vmem:[%s1 + $0xa0] sm:$0xff]
    %v58 = vld [vmem:[%s1 + $0xa8] sm:$0xff]
    %v59 = vld [vmem:[%s1 + $0xb0] sm:$0xff]
    %v60 = vld [vmem:[%s1 + $0xb8] sm:$0xff]
    %v61 = vld [vmem:[%s1 + $0xc0] sm:$0xff]
    %v62 = vld [vmem:[%s1 + $0xc8] sm:$0xff]
    %v63 = vld [vmem:[%s1 + $0xd0] sm:$0xff]
    %v64 = vld [vmem:[%s1 + $0xd8] sm:$0xff]
    %v65 = vld [vmem:[%s1 + $0xe0] sm:$0xff]
    %v66 = vld [vmem:[%s1 + $0xe8] sm:$0xff]
    %v67 = vld [vmem:[%s1 + $0xf0] sm:$0xff]
    %v68 = vld [vmem:[%s1 + $0xf8] sm:$0xff]
    %v69 = vld [vmem:[%s1 + $0x100] sm:$0xff]
    %v70 = vld [vmem:[%s1 + $0x108] sm:$0xff]
    %v71 = vld [vmem:[%s1 + $0x110] sm:$0xff]
    %v72 = vld [vmem:[%s1 + $0x118] sm:$0xff]
    %v73 = vld [vmem:[%s1 + $0x120] sm:$0xff]
    %v74 = vld [vmem:[%s1 + $0x128] sm:$0xff]
    %v75 = vld [vmem:[%s1 + $0x130] sm:$0xff]
    %v76 = vld [vmem:[%s1 + $0x138] sm:$0xff]
    %v77 = vld [vmem:[%s1 + $0x140] sm:$0xff]
    %v78 = vld [vmem:[%s1 + $0x148] sm:$0xff]
    %v79 = vld [vmem:[%s1 + $0x150] sm:$0xff]
    %v80 = vld [vmem:[%s1 + $0x158] sm:$0xff]
    %v81 = vld [vmem:[%s1 + $0x160] sm:$0xff]
    %v82 = vld [vmem:[%s1 + $0x168] sm:$0xff]
    %v83 = vld [vmem:[%s1 + $0x170] sm:$0xff]
    %v84 = vld [vmem:[%s1 + $0x178] sm:$0xff]
    %v85 = vld [vmem:[%s1 + $0x180] sm:$0xff]
    %v86 = vld [vmem:[%s1 + $0x188] sm:$0xff]
    %v87 = vld [vmem:[%s1 + $0x190] sm:$0xff]
    %v88 = vld [vmem:[%s1 + $0x198] sm:$0xff]
    %v89 = vld [vmem:[%s1 + $0x1a0] sm:$0xff]
    %v90 = vld [vmem:[%s1 + $0x1a8] sm:$0xff]
    %v91 = vld [vmem:[%s1 + $0x1b0] sm:$0xff]
    %v92 = vld [vmem:[%s1 + $0x1b8] sm:$0xff]
    %v93 = vld [vmem:[%s1 + $0x1c0] sm:$0xff]
    %v94 = vld [vmem:[%s1 + $0x1c8] sm:$0xff]
    %v95 = vld [vmem:[%s1 + $0x1d0] sm:$0xff]
    %v96 = vld [vmem:[%s1 + $0x1d8] sm:$0xff]
    %v97 = vld [vmem:[%s1 + $0x1e0] sm:$0xff]
    %v98 = vld [vmem:[%s1 + $0x1e8] sm:$0xff]
    %v99 = vld [vmem:[%s1 + $0x1f0] sm:$0xff]
    %v100 = vld [vmem:[%s1 + $0x1f8] sm:$0xff]
    %v101 = vld [vmem:[%s1 + $0x200] sm:$0xff]
    %v102 = vld [vmem:[%s1 + $0x208] sm:$0xff]
    %v103 = vld [vmem:[%s1 + $0x210] sm:$0xff]
    %v104 = vld [vmem:[%s1 + $0x218] sm:$0xff]
    %v105 = vld [vmem:[%s1 + $0x220] sm:$0xff]
    %v106 = vld [vmem:[%s1 + $0x228] sm:$0xff]
    %v107 = vld [vmem:[%s1 + $0x230] sm:$0xff]
    %v108 = vld [vmem:[%s1 + $0x238] sm:$0xff]
    %v109 = vld [vmem:[%s1 + $0x240] sm:$0xff]
    %v110 = vld [vmem:[%s1 + $0x248] sm:$0xff]
    %v111 = vld [vmem:[%s1 + $0x250] sm:$0xff]
    %v112 = vld [vmem:[%s1 + $0x258] sm:$0xff]
    %v113 = vld [vmem:[%s1 + $0x260] sm:$0xff]
    %v114 = vld [vmem:[%s1 + $0x268] sm:$0xff]
    %v115 = vld [vmem:[%s1 + $0x270] sm:$0xff]
    %v116 = vld [vmem:[%s1 + $0x278] sm:$0xff]
    %v117 = vld [vmem:[%s1 + $0x280] sm:$0xff]
    %v118 = vld [vmem:[%s1 + $0x288] sm:$0xff]
    %v119 = vld [vmem:[%s1 + $0x290] sm:$0xff]
    %v120 = vld [vmem:[%s1 + $0x298] sm:$0xff]
    %v121 = vld [vmem:[%s1 + $0x2a0] sm:$0xff]
    %v122 = vld [vmem:[%s1 + $0x2a8] sm:$0xff]
    %v123 = vld [vmem:[%s1 + $0x2b0] sm:$0xff]
    %v124 = vld [vmem:[%s1 + $0x2b8] sm:$0xff]
    %v125 = vld [vmem:[%s1 + $0x2c0] sm:$0xff]
    %v126 = vld [vmem:[%s1 + $0x2c8] sm:$0xff]
    %v127 = vld [vmem:[%s1 + $0x2d0] sm:$0xff]
    %v128 = vld [vmem:[%s1 + $0x2d8] sm:$0xff]
    %v129 = vld [vmem:[%s1 + $0x2e0] sm:$0xff]
    %v130 = vld [vmem:[%s1 + $0x2e8] sm:$0xff]
    %v131 = vld [vmem:[%s1 + $0x2f0] sm:$0xff]
    %v132 = vld [vmem:[%s1 + $0x2f8] sm:$0xff]
    %v133 = vld [vmem:[%s1 + $0x300] sm:$0xff]
    %v134 = vld [vmem:[%s1 + $0x308] sm:$0xff]
    %v135 = vld [vmem:[%s1 + $0x310] sm:$0xff]
    %v136 = vld [vmem:[%s1 + $0x318] sm:$0xff]
    %v137 = vld [vmem:[%s1 + $0x320] sm:$0xff]
    %v138 = vld [vmem:[%s1 + $0x328] sm:$0xff]
    %v139 = vld [vmem:[%s1 + $0x330] sm:$0xff]
    %v140 = vld [vmem:[%s1 + $0x338] sm:$0xff]
    %v141 = vld [vmem:[%s1 + $0x340] sm:$0xff]
    %v142 = vld [vmem:[%s1 + $0x348] sm:$0xff]
    %v143 = vld [vmem:[%s1 + $0x350] sm:$0xff]
    %v144 = vld [vmem:[%s1 + $0x358] sm:$0xff]
    %v145 = vld [vmem:[%s1 + $0x360] sm:$0xff]
    %v146 = vld [vmem:[%s1 + $0x368] sm:$0xff]
    %v147 = vld [vmem:[%s1 + $0x370] sm:$0xff]
    %v148 = vld [vmem:[%s1 + $0x378] sm:$0xff]
    %v149 = vld [vmem:[%s1 + $0x380] sm:$0xff]
    %v150 = vld [vmem:[%s1 + $0x388] sm:$0xff]
    %v151 = vld [vmem:[%s1 + $0x390] sm:$0xff]
    %v152 = vld [vmem:[%s1 + $0x398] sm:$0xff]
    %v153 = vld [vmem:[%s1 + $0x3a0] sm:$0xff]
    %v154 = vld [vmem:[%s1 + $0x3a8] sm:$0xff]
    %v155 = vld [vmem:[%s1 + $0x3b0] sm:$0xff]
    %v156 = vld [vmem:[%s1 + $0x3b8] sm:$0xff]
    %v157 = vld [vmem:[%s1 + $0x3c0] sm:$0xff]
    %v158 = vld [vmem:[%s1 + $0x3c8] sm:$0xff]
    %v159 = vld [vmem:[%s1 + $0x3d0] sm:$0xff]
    %v160 = vld [vmem:[%s1 + $0x3d8] sm:$0xff]
    %v161 = vld [vmem:[%s1 + $0x3e0] sm:$0xff]
    %v162 = vld [vmem:[%s1 + $0x3e8] sm:$0xff]
    %v163 = vld [vmem:[%s1 + $0x3f0] sm:$0xff]
    %v164 = vld [vmem:[%s1 + $0x3f8] sm:$0xff]
    %v165 = vld [vmem:[%s1 + $0x400] sm:$0xff]
    %v166 = vld [vmem:[%s1 + $0x408] sm:$0xff]
    %v167 = vld [vmem:[%s1 + $0x410] sm:$0xff]
    %v168 = vld [vmem:[%s1 + $0x418] sm:$0xff]
    %v169 = vld [vmem:[%s1 + $0x420] sm:$0xff]
    %v170 = vld [vmem:[%s1 + $0x428] sm:$0xff]
    %v171 = vld [vmem:[%s1 + $0x430] sm:$0xff]
    %v172 = vld [vmem:[%s1 + $0x438] sm:$0xff]
    %v173 = vld [vmem:[%s1 + $0x440] sm:$0xff]
    %v174 = vld [vmem:[%s1 + $0x448] sm:$0xff]
    %v175 = vld [vmem:[%s1 + $0x450] sm:$0xff]
    %v176 = vld [vmem:[%s1 + $0x458] sm:$0xff]
    %v177 = vld [vmem:[%s1 + $0x460] sm:$0xff]
    %v178 = vld [vmem:[%s1 + $0x468] sm:$0xff]
    %v179 = vld [vmem:[%s1 + $0x470] sm:$0xff]
    %v180 = vld [vmem:[%s1 + $0x478] sm:$0xff]
    %v181 = vld [vmem:[%s1 + $0x480] sm:$0xff]
    %v182 = vld [vmem:[%s1 + $0x488] sm:$0xff]
    %v183 = vld [vmem:[%s1 + $0x490] sm:$0xff]
    %v184 = vld [vmem:[%s1 + $0x498] sm:$0xff]
    %v185 = vld [vmem:[%s1 + $0x4a0] sm:$0xff]
    %v186 = vld [vmem:[%s1 + $0x4a8] sm:$0xff]
    %v187 = vld [vmem:[%s1 + $0x4b0] sm:$0xff]
    %v188 = vld [vmem:[%s1 + $0x4b8] sm:$0xff]
    %v189 = vld [vmem:[%s1 + $0x4c0] sm:$0xff]
    %v190 = vld [vmem:[%s1 + $0x4c8] sm:$0xff]
    %v191 = vld [vmem:[%s1 + $0x4d0] sm:$0xff]
    %v192 = vld [vmem:[%s1 + $0x4d8] sm:$0xff]
    %v193 = vld [vmem:[%s1 + $0x4e0] sm:$0xff]
    %v194 = vld [vmem:[%s1 + $0x4e8] sm:$0xff]
    %v195 = vld [vmem:[%s1 + $0x4f0] sm:$0xff]
    %v196 = vld [vmem:[%s1 + $0x4f8] sm:$0xff]
    %v197 = vld [vmem:[%s1 + $0x500] sm:$0xff]
    %v198 = vld [vmem:[%s1 + $0x508] sm:$0xff]
    %v199 = vld [vmem:[%s1 + $0x510] sm:$0xff]
    %v200 = vld [vmem:[%s1 + $0x518] sm:$0xff]
    %v201 = vld [vmem:[%s1 + $0x520] sm:$0xff]
    %v202 = vld [vmem:[%s1 + $0x528] sm:$0xff]
    %v203 = vld [vmem:[%s1 + $0x530] sm:$0xff]
    %v204 = vld [vmem:[%s1 + $0x538] sm:$0xff]
    %v205 = vld [vmem:[%s1 + $0x540] sm:$0xff]
    %v206 = vld [vmem:[%s1 + $0x548] sm:$0xff]
    %v207 = vld [vmem:[%s1 + $0x550] sm:$0xff]
    %v208 = vld [vmem:[%s1 + $0x558] sm:$0xff]
    %v209 = vld [vmem:[%s1 + $0x560] sm:$0xff]
    %v210 = vld [vmem:[%s1 + $0x568] sm:$0xff]
    %v211 = vld [vmem:[%s1 + $0x570] sm:$0xff]
    %v212 = vld [vmem:[%s1 + $0x578] sm:$0xff]
    %v213 = vld [vmem:[%s1 + $0x580] sm:$0xff]
    %v214 = vld [vmem:[%s1 + $0x588] sm:$0xff]
    %v215 = vld [vmem:[%s1 + $0x590] sm:$0xff]
    %v216 = vld [vmem:[%s1 + $0x598] sm:$0xff]
    %v217 = vld [vmem:[%s1 + $0x5a0] sm:$0xff]
    %v218 = vld [vmem:[%s1 + $0x5a8] sm:$0xff]
    %v219 = vld [vmem:[%s1 + $0x5b0] sm:$0xff]
    %v220 = vld [vmem:[%s1 + $0x5b8] sm:$0xff]
    %v221 = vld [vmem:[%s1 + $0x5c0] sm:$0xff]
    %v222 = vld [vmem:[%s1 + $0x5c8] sm:$0xff]
    %v223 = vld [vmem:[%s1 + $0x5d0] sm:$0xff]
    %v224 = vld [vmem:[%s1 + $0x5d8] sm:$0xff]
    %v225 = vld [vmem:[%s1 + $0x5e0] sm:$0xff]
    %v226 = vld [vmem:[%s1 + $0x5e8] sm:$0xff]
    %v227 = vld [vmem:[%s1 + $0x5f0] sm:$0xff]
    %v228 = vld [vmem:[%s1 + $0x5f8] sm:$0xff]
    %v229 = vld [vmem:[%s1 + $0x600] sm:$0xff]
    %v230 = vld [vmem:[%s1 + $0x608] sm:$0xff]
    %v231 = vld [vmem:[%s1 + $0x610] sm:$0xff]
    %v232 = vld [vmem:[%s1 + $0x618] sm:$0xff]
    %v233 = vld [vmem:[%s1 + $0x620] sm:$0xff]
    %v234 = vld [vmem:[%s1 + $0x628] sm:$0xff]
    %v235 = vld [vmem:[%s1 + $0x630] sm:$0xff]
    %v236 = vld [vmem:[%s1 + $0x638] sm:$0xff]
    %v237 = vld [vmem:[%s1 + $0x640] sm:$0xff]
    %v238 = vld [vmem:[%s1 + $0x648] sm:$0xff]
    %v239 = vld [vmem:[%s1 + $0x650] sm:$0xff]
    %v240 = vld [vmem:[%s1 + $0x658] sm:$0xff]
    %v241 = vld [vmem:[%s1 + $0x660] sm:$0xff]
    %v242 = vld [vmem:[%s1 + $0x668] sm:$0xff]
    %v243 = vld [vmem:[%s1 + $0x670] sm:$0xff]
    %v244 = vld [vmem:[%s1 + $0x678] sm:$0xff]
    %v245 = vld [vmem:[%s1 + $0x680] sm:$0xff]
    %v246 = vld [vmem:[%s1 + $0x688] sm:$0xff]
    %v247 = vld [vmem:[%s1 + $0x690] sm:$0xff]
    %v248 = vld [vmem:[%s1 + $0x698] sm:$0xff]
    %v249 = vld [vmem:[%s1 + $0x6a0] sm:$0xff]
    %v250 = vld [vmem:[%s1 + $0x6a8] sm:$0xff]
    %v251 = vld [vmem:[%s1 + $0x6b0] sm:$0xff]
    %v252 = vld [vmem:[%s1 + $0x6b8] sm:$0xff]
    %v253 = vld [vmem:[%s1 + $0x6c0] sm:$0xff]
    %v254 = vld [vmem:[%s1 + $0x6c8] sm:$0xff]
    %v255 = vld [vmem:[%s1 + $0x6d0] sm:$0xff]
    %v256 = vld [vmem:[%s1 + $0x6d8] sm:$0xff]
    %v257 = vld [vmem:[%s1 + $0x6e0] sm:$0xff]
    %v258 = vld [vmem:[%s1 + $0x6e8] sm:$0xff]
    %v259 = vld [vmem:[%s1 + $0x6f0] sm:$0xff]
    %v260 = vld [vmem:[%s1 + $0x6f8] sm:$0xff]
    %v261 = vld [vmem:[%s1 + $0x700] sm:$0xff]
    %v262 = vld [vmem:[%s1 + $0x708] sm:$0xff]
    %v263 = vld [vmem:[%s1 + $0x710] sm:$0xff]
    %v264 = vld [vmem:[%s1 + $0x718] sm:$0xff]
    %v265 = vld [vmem:[%s1 + $0x720] sm:$0xff]
    %v266 = vld [vmem:[%s1 + $0x728] sm:$0xff]
    %v267 = vld [vmem:[%s1 + $0x730] sm:$0xff]
    %v268 = vld [vmem:[%s1 + $0x738] sm:$0xff]
    %v269 = vld [vmem:[%s1 + $0x740] sm:$0xff]
    %v270 = vld [vmem:[%s1 + $0x748] sm:$0xff]
    %v271 = vld [vmem:[%s1 + $0x750] sm:$0xff]
    %v272 = vld [vmem:[%s1 + $0x758] sm:$0xff]
    %v273 = vld [vmem:[%s1 + $0x760] sm:$0xff]
    %v274 = vld [vmem:[%s1 + $0x768] sm:$0xff]
    %v275 = vld [vmem:[%s1 + $0x770] sm:$0xff]
    %v276 = vld [vmem:[%s1 + $0x778] sm:$0xff]
    %v277 = vld [vmem:[%s1 + $0x780] sm:$0xff]
    %v278 = vld [vmem:[%s1 + $0x788] sm:$0xff]
    %v279 = vld [vmem:[%s1 + $0x790] sm:$0xff]
    %v280 = vld [vmem:[%s1 + $0x798] sm:$0xff]
    %v281 = vld [vmem:[%s1 + $0x7a0] sm:$0xff]
    %v282 = vld [vmem:[%s1 + $0x7a8] sm:$0xff]
    %v283 = vld [vmem:[%s1 + $0x7b0] sm:$0xff]
    %v284 = vld [vmem:[%s1 + $0x7b8] sm:$0xff]
    %v285 = vld [vmem:[%s1 + $0x7c0] sm:$0xff]
    %v286 = vld [vmem:[%s1 + $0x7c8] sm:$0xff]
    %v287 = vld [vmem:[%s1 + $0x7d0] sm:$0xff]
    %v288 = vld [vmem:[%s1 + $0x7d8] sm:$0xff]
    %v289 = vld [vmem:[%s1 + $0x7e0] sm:$0xff]
    %v290 = vld [vmem:[%s1 + $0x7e8] sm:$0xff]
    %v291 = vld [vmem:[%s1 + $0x7f0] sm:$0xff]
    %v292 = vld [vmem:[%s1 + $0x7f8] sm:$0xff]
    %v293 = vld [vmem:[%s2] sm:$0x1]
    %v295 = vlaneseq
    %v296 = vshrl.u32 %v295, 7
    %v297 = vsub.s32 0, %v296
    %v298 = vrot.slane %v293, %v297
    %v304 = vcombine.high %v33, %v33
    %v306 = vunpack.c.l.s4 1983009808
    %v307 = vunpack.c.0.s8 %v306
    %v308 = vlaneseq
    %v309 = vshrl.u32 %v308, 7
    %v310 = vsub.s32 %v307, %v309
    %v311 = vrot.slane %v33, %v310
    %v313 = vunpack.c.l.s4 1983009808
    %v314 = vunpack.c.0.s8 %v313
    %v315 = vlaneseq
    %v316 = vshrl.u32 %v315, 7
    %v317 = vsub.s32 %v314, %v316
    %v318 = vrot.slane %v304, %v317
    %v319 = vcombine.high %v311, %v311
    %v320 = vcombine.high %v318, %v318
    %v321 = vcombine.high %v34, %v34
    %v323 = vunpack.c.l.s4 1983009808
    %v324 = vunpack.c.0.s8 %v323
    %v325 = vlaneseq
    %v326 = vshrl.u32 %v325, 7
    %v327 = vsub.s32 %v324, %v326
    %v328 = vrot.slane %v34, %v327
    %v330 = vunpack.c.l.s4 1983009808
    %v331 = vunpack.c.0.s8 %v330
    %v332 = vlaneseq
    %v333 = vshrl.u32 %v332, 7
    %v334 = vsub.s32 %v331, %v333
    %v335 = vrot.slane %v321, %v334
    %v336 = vcombine.high %v328, %v328
    %v337 = vcombine.high %v335, %v335
    %v338 = vcombine.high %v35, %v35
    %v340 = vunpack.c.l.s4 1983009808
    %v341 = vunpack.c.0.s8 %v340
    %v342 = vlaneseq
    %v343 = vshrl.u32 %v342, 7
    %v344 = vsub.s32 %v341, %v343
    %v345 = vrot.slane %v35, %v344
    %v347 = vunpack.c.l.s4 1983009808
    %v348 = vunpack.c.0.s8 %v347
    %v349 = vlaneseq
    %v350 = vshrl.u32 %v349, 7
    %v351 = vsub.s32 %v348, %v350
    %v352 = vrot.slane %v338, %v351
    %v353 = vcombine.high %v345, %v345
    %v354 = vcombine.high %v352, %v352
    %v355 = vcombine.high %v36, %v36
    %v357 = vunpack.c.l.s4 1983009808
    %v358 = vunpack.c.0.s8 %v357
    %v359 = vlaneseq
    %v360 = vshrl.u32 %v359, 7
    %v361 = vsub.s32 %v358, %v360
    %v362 = vrot.slane %v36, %v361
    %v364 = vunpack.c.l.s4 1983009808
    %v365 = vunpack.c.0.s8 %v364
    %v366 = vlaneseq
    %v367 = vshrl.u32 %v366, 7
    %v368 = vsub.s32 %v365, %v367
    %v369 = vrot.slane %v355, %v368
    %v370 = vcombine.high %v362, %v362
    %v371 = vcombine.high %v369, %v369
    %388 = vmatprep.subr.mxu0 0.0
    %389 = vmatpush1.msra.mxu0 %v37
    %390 = vmatprep.subr.mxu0 0.0
    %391 = vmatpush1.msra.mxu0 %v38
    %392 = vmatprep.subr.mxu0 0.0
    %393 = vmatpush1.msra.mxu0 %v39
    %394 = vmatprep.subr.mxu0 0.0
    %395 = vmatpush1.msra.mxu0 %v40
    %396 = vmatprep.subr.mxu0 0.0
    %397 = vmatpush1.msra.mxu0 %v41
    %398 = vmatprep.subr.mxu0 0.0
    %399 = vmatpush1.msra.mxu0 %v42
    %400 = vmatprep.subr.mxu0 0.0
    %401 = vmatpush1.msra.mxu0 %v43
    %402 = vmatprep.subr.mxu0 0.0
    %403 = vmatpush1.msra.mxu0 %v44
    %404 = vmatprep.subr.mxu0 0.0
    %405 = vmatpush1.msra.mxu0 %v45
    %406 = vmatprep.subr.mxu0 0.0
    %407 = vmatpush1.msra.mxu0 %v46
    %408 = vmatprep.subr.mxu0 0.0
    %409 = vmatpush1.msra.mxu0 %v47
    %410 = vmatprep.subr.mxu0 0.0
    %411 = vmatpush1.msra.mxu0 %v48
    %412 = vmatprep.subr.mxu0 0.0
    %413 = vmatpush1.msra.mxu0 %v49
    %414 = vmatprep.subr.mxu0 0.0
    %415 = vmatpush1.msra.mxu0 %v50
    %416 = vmatprep.subr.mxu0 0.0
    %417 = vmatpush1.msra.mxu0 %v51
    %418 = vmatprep.subr.mxu0 0.0
    %419 = vmatpush1.msra.mxu0 %v52
    %420 = vmatprep.subr.mxu0 0.0
    %421 = vmatpush1.msra.mxu0 %v53
    %422 = vmatprep.subr.mxu0 0.0
    %423 = vmatpush1.msra.mxu0 %v54
    %424 = vmatprep.subr.mxu0 0.0
    %425 = vmatpush1.msra.mxu0 %v55
    %426 = vmatprep.subr.mxu0 0.0
    %427 = vmatpush1.msra.mxu0 %v56
    %428 = vmatprep.subr.mxu0 0.0
    %429 = vmatpush1.msra.mxu0 %v57
    %430 = vmatprep.subr.mxu0 0.0
    %431 = vmatpush1.msra.mxu0 %v58
    %432 = vmatprep.subr.mxu0 0.0
    %433 = vmatpush1.msra.mxu0 %v59
    %434 = vmatprep.subr.mxu0 0.0
    %435 = vmatpush1.msra.mxu0 %v60
    %436 = vmatprep.subr.mxu0 0.0
    %437 = vmatpush1.msra.mxu0 %v61
    %438 = vmatprep.subr.mxu0 0.0
    %439 = vmatpush1.msra.mxu0 %v62
    %440 = vmatprep.subr.mxu0 0.0
    %441 = vmatpush1.msra.mxu0 %v63
    %442 = vmatprep.subr.mxu0 0.0
    %443 = vmatpush1.msra.mxu0 %v64
    %444 = vmatprep.subr.mxu0 0.0
    %445 = vmatpush1.msra.mxu0 %v65
    %446 = vmatprep.subr.mxu0 0.0
    %447 = vmatpush1.msra.mxu0 %v66
    %448 = vmatprep.subr.mxu0 0.0
    %449 = vmatpush1.msra.mxu0 %v67
    %450 = vmatprep.subr.mxu0 0.0
    %451 = vmatpush1.msra.mxu0 %v68
    %452 = vmatprep.mubr.f32.mxu0 %v319
    %453 = vmatmul.mubr.f32.gmra.mrb[0].mxu0 %v311
    %v454 = vpop.f32.mrb[0].mxu0
    %v455 = vadd.f32 %v298, %v454
    %v456 = vpop.f32.mrb[0].mxu0
    %457 = vdwg.mxu0
    %458 = vmatprep.subr.mxu0 0.0
    %459 = vmatpush1.msra.mxu0 %v69
    %460 = vmatprep.subr.mxu0 0.0
    %461 = vmatpush1.msra.mxu0 %v70
    %462 = vmatprep.subr.mxu0 0.0
    %463 = vmatpush1.msra.mxu0 %v71
    %464 = vmatprep.subr.mxu0 0.0
    %465 = vmatpush1.msra.mxu0 %v72
    %466 = vmatprep.subr.mxu0 0.0
    %467 = vmatpush1.msra.mxu0 %v73
    %468 = vmatprep.subr.mxu0 0.0
    %469 = vmatpush1.msra.mxu0 %v74
    %470 = vmatprep.subr.mxu0 0.0
    %471 = vmatpush1.msra.mxu0 %v75
    %472 = vmatprep.subr.mxu0 0.0
    %473 = vmatpush1.msra.mxu0 %v76
    %474 = vmatprep.subr.mxu0 0.0
    %475 = vmatpush1.msra.mxu0 %v77
    %476 = vmatprep.subr.mxu0 0.0
    %477 = vmatpush1.msra.mxu0 %v78
    %478 = vmatprep.subr.mxu0 0.0
    %479 = vmatpush1.msra.mxu0 %v79
    %480 = vmatprep.subr.mxu0 0.0
    %481 = vmatpush1.msra.mxu0 %v80
    %482 = vmatprep.subr.mxu0 0.0
    %483 = vmatpush1.msra.mxu0 %v81
    %484 = vmatprep.subr.mxu0 0.0
    %485 = vmatpush1.msra.mxu0 %v82
    %486 = vmatprep.subr.mxu0 0.0
    %487 = vmatpush1.msra.mxu0 %v83
    %488 = vmatprep.subr.mxu0 0.0
    %489 = vmatpush1.msra.mxu0 %v84
    %490 = vmatprep.subr.mxu0 0.0
    %491 = vmatpush1.msra.mxu0 %v85
    %492 = vmatprep.subr.mxu0 0.0
    %493 = vmatpush1.msra.mxu0 %v86
    %494 = vmatprep.subr.mxu0 0.0
    %495 = vmatpush1.msra.mxu0 %v87
    %496 = vmatprep.subr.mxu0 0.0
    %497 = vmatpush1.msra.mxu0 %v88
    %498 = vmatprep.subr.mxu0 0.0
    %499 = vmatpush1.msra.mxu0 %v89
    %500 = vmatprep.subr.mxu0 0.0
    %501 = vmatpush1.msra.mxu0 %v90
    %502 = vmatprep.subr.mxu0 0.0
    %503 = vmatpush1.msra.mxu0 %v91
    %504 = vmatprep.subr.mxu0 0.0
    %505 = vmatpush1.msra.mxu0 %v92
    %506 = vmatprep.subr.mxu0 0.0
    %507 = vmatpush1.msra.mxu0 %v93
    %508 = vmatprep.subr.mxu0 0.0
    %509 = vmatpush1.msra.mxu0 %v94
    %510 = vmatprep.subr.mxu0 0.0
    %511 = vmatpush1.msra.mxu0 %v95
    %512 = vmatprep.subr.mxu0 0.0
    %513 = vmatpush1.msra.mxu0 %v96
    %514 = vmatprep.subr.mxu0 0.0
    %515 = vmatpush1.msra.mxu0 %v97
    %516 = vmatprep.subr.mxu0 0.0
    %517 = vmatpush1.msra.mxu0 %v98
    %518 = vmatprep.subr.mxu0 0.0
    %519 = vmatpush1.msra.mxu0 %v99
    %520 = vmatprep.subr.mxu0 0.0
    %521 = vmatpush1.msra.mxu0 %v100
    %522 = vmatprep.mubr.f32.mxu0 %v320
    %523 = vmatmul.mubr.f32.gmra.mrb[0].mxu0 %v318
    %v524 = vpop.f32.mrb[0].mxu0
    %v525 = vadd.f32 %v455, %v524
    %v526 = vpop.f32.mrb[0].mxu0
    %527 = vdwg.mxu0
    %528 = vmatprep.subr.mxu0 0.0
    %529 = vmatpush1.msra.mxu0 %v101
    %530 = vmatprep.subr.mxu0 0.0
    %531 = vmatpush1.msra.mxu0 %v102
    %532 = vmatprep.subr.mxu0 0.0
    %533 = vmatpush1.msra.mxu0 %v103
    %534 = vmatprep.subr.mxu0 0.0
    %535 = vmatpush1.msra.mxu0 %v104
    %536 = vmatprep.subr.mxu0 0.0
    %537 = vmatpush1.msra.mxu0 %v105
    %538 = vmatprep.subr.mxu0 0.0
    %539 = vmatpush1.msra.mxu0 %v106
    %540 = vmatprep.subr.mxu0 0.0
    %541 = vmatpush1.msra.mxu0 %v107
    %542 = vmatprep.subr.mxu0 0.0
    %543 = vmatpush1.msra.mxu0 %v108
    %544 = vmatprep.subr.mxu0 0.0
    %545 = vmatpush1.msra.mxu0 %v109
    %546 = vmatprep.subr.mxu0 0.0
    %547 = vmatpush1.msra.mxu0 %v110
    %548 = vmatprep.subr.mxu0 0.0
    %549 = vmatpush1.msra.mxu0 %v111
    %550 = vmatprep.subr.mxu0 0.0
    %551 = vmatpush1.msra.mxu0 %v112
    %552 = vmatprep.subr.mxu0 0.0
    %553 = vmatpush1.msra.mxu0 %v113
    %554 = vmatprep.subr.mxu0 0.0
    %555 = vmatpush1.msra.mxu0 %v114
    %556 = vmatprep.subr.mxu0 0.0
    %557 = vmatpush1.msra.mxu0 %v115
    %558 = vmatprep.subr.mxu0 0.0
    %559 = vmatpush1.msra.mxu0 %v116
    %560 = vmatprep.subr.mxu0 0.0
    %561 = vmatpush1.msra.mxu0 %v117
    %562 = vmatprep.subr.mxu0 0.0
    %563 = vmatpush1.msra.mxu0 %v118
    %564 = vmatprep.subr.mxu0 0.0
    %565 = vmatpush1.msra.mxu0 %v119
    %566 = vmatprep.subr.mxu0 0.0
    %567 = vmatpush1.msra.mxu0 %v120
    %568 = vmatprep.subr.mxu0 0.0
    %569 = vmatpush1.msra.mxu0 %v121
    %570 = vmatprep.subr.mxu0 0.0
    %571 = vmatpush1.msra.mxu0 %v122
    %572 = vmatprep.subr.mxu0 0.0
    %573 = vmatpush1.msra.mxu0 %v123
    %574 = vmatprep.subr.mxu0 0.0
    %575 = vmatpush1.msra.mxu0 %v124
    %576 = vmatprep.subr.mxu0 0.0
    %577 = vmatpush1.msra.mxu0 %v125
    %578 = vmatprep.subr.mxu0 0.0
    %579 = vmatpush1.msra.mxu0 %v126
    %580 = vmatprep.subr.mxu0 0.0
    %581 = vmatpush1.msra.mxu0 %v127
    %582 = vmatprep.subr.mxu0 0.0
    %583 = vmatpush1.msra.mxu0 %v128
    %584 = vmatprep.subr.mxu0 0.0
    %585 = vmatpush1.msra.mxu0 %v129
    %586 = vmatprep.subr.mxu0 0.0
    %587 = vmatpush1.msra.mxu0 %v130
    %588 = vmatprep.subr.mxu0 0.0
    %589 = vmatpush1.msra.mxu0 %v131
    %590 = vmatprep.subr.mxu0 0.0
    %591 = vmatpush1.msra.mxu0 %v132
    %592 = vmatprep.mubr.f32.mxu0 %v336
    %593 = vmatmul.mubr.f32.gmra.mrb[0].mxu0 %v328
    %v594 = vpop.f32.mrb[0].mxu0
    %v595 = vadd.f32 %v525, %v594
    %v596 = vpop.f32.mrb[0].mxu0
    %597 = vdwg.mxu0
    %598 = vmatprep.subr.mxu0 0.0
    %599 = vmatpush1.msra.mxu0 %v133
    %600 = vmatprep.subr.mxu0 0.0
    %601 = vmatpush1.msra.mxu0 %v134
    %602 = vmatprep.subr.mxu0 0.0
    %603 = vmatpush1.msra.mxu0 %v135
    %604 = vmatprep.subr.mxu0 0.0
    %605 = vmatpush1.msra.mxu0 %v136
    %606 = vmatprep.subr.mxu0 0.0
    %607 = vmatpush1.msra.mxu0 %v137
    %608 = vmatprep.subr.mxu0 0.0
    %609 = vmatpush1.msra.mxu0 %v138
    %610 = vmatprep.subr.mxu0 0.0
    %611 = vmatpush1.msra.mxu0 %v139
    %612 = vmatprep.subr.mxu0 0.0
    %613 = vmatpush1.msra.mxu0 %v140
    %614 = vmatprep.subr.mxu0 0.0
    %615 = vmatpush1.msra.mxu0 %v141
    %616 = vmatprep.subr.mxu0 0.0
    %617 = vmatpush1.msra.mxu0 %v142
    %618 = vmatprep.subr.mxu0 0.0
    %619 = vmatpush1.msra.mxu0 %v143
    %620 = vmatprep.subr.mxu0 0.0
    %621 = vmatpush1.msra.mxu0 %v144
    %622 = vmatprep.subr.mxu0 0.0
    %623 = vmatpush1.msra.mxu0 %v145
    %624 = vmatprep.subr.mxu0 0.0
    %625 = vmatpush1.msra.mxu0 %v146
    %626 = vmatprep.subr.mxu0 0.0
    %627 = vmatpush1.msra.mxu0 %v147
    %628 = vmatprep.subr.mxu0 0.0
    %629 = vmatpush1.msra.mxu0 %v148
    %630 = vmatprep.subr.mxu0 0.0
    %631 = vmatpush1.msra.mxu0 %v149
    %632 = vmatprep.subr.mxu0 0.0
    %633 = vmatpush1.msra.mxu0 %v150
    %634 = vmatprep.subr.mxu0 0.0
    %635 = vmatpush1.msra.mxu0 %v151
    %636 = vmatprep.subr.mxu0 0.0
    %637 = vmatpush1.msra.mxu0 %v152
    %638 = vmatprep.subr.mxu0 0.0
    %639 = vmatpush1.msra.mxu0 %v153
    %640 = vmatprep.subr.mxu0 0.0
    %641 = vmatpush1.msra.mxu0 %v154
    %642 = vmatprep.subr.mxu0 0.0
    %643 = vmatpush1.msra.mxu0 %v155
    %644 = vmatprep.subr.mxu0 0.0
    %645 = vmatpush1.msra.mxu0 %v156
    %646 = vmatprep.subr.mxu0 0.0
    %647 = vmatpush1.msra.mxu0 %v157
    %648 = vmatprep.subr.mxu0 0.0
    %649 = vmatpush1.msra.mxu0 %v158
    %650 = vmatprep.subr.mxu0 0.0
    %651 = vmatpush1.msra.mxu0 %v159
    %652 = vmatprep.subr.mxu0 0.0
    %653 = vmatpush1.msra.mxu0 %v160
    %654 = vmatprep.subr.mxu0 0.0
    %655 = vmatpush1.msra.mxu0 %v161
    %656 = vmatprep.subr.mxu0 0.0
    %657 = vmatpush1.msra.mxu0 %v162
    %658 = vmatprep.subr.mxu0 0.0
    %659 = vmatpush1.msra.mxu0 %v163
    %660 = vmatprep.subr.mxu0 0.0
    %661 = vmatpush1.msra.mxu0 %v164
    %662 = vmatprep.mubr.f32.mxu0 %v337
    %663 = vmatmul.mubr.f32.gmra.mrb[0].mxu0 %v335
    %v664 = vpop.f32.mrb[0].mxu0
    %v665 = vadd.f32 %v595, %v664
    %v666 = vpop.f32.mrb[0].mxu0
    %667 = vdwg.mxu0
    %668 = vmatprep.subr.mxu0 0.0
    %669 = vmatpush1.msra.mxu0 %v165
    %670 = vmatprep.subr.mxu0 0.0
    %671 = vmatpush1.msra.mxu0 %v166
    %672 = vmatprep.subr.mxu0 0.0
    %673 = vmatpush1.msra.mxu0 %v167
    %674 = vmatprep.subr.mxu0 0.0
    %675 = vmatpush1.msra.mxu0 %v168
    %676 = vmatprep.subr.mxu0 0.0
    %677 = vmatpush1.msra.mxu0 %v169
    %678 = vmatprep.subr.mxu0 0.0
    %679 = vmatpush1.msra.mxu0 %v170
    %680 = vmatprep.subr.mxu0 0.0
    %681 = vmatpush1.msra.mxu0 %v171
    %682 = vmatprep.subr.mxu0 0.0
    %683 = vmatpush1.msra.mxu0 %v172
    %684 = vmatprep.subr.mxu0 0.0
    %685 = vmatpush1.msra.mxu0 %v173
    %686 = vmatprep.subr.mxu0 0.0
    %687 = vmatpush1.msra.mxu0 %v174
    %688 = vmatprep.subr.mxu0 0.0
    %689 = vmatpush1.msra.mxu0 %v175
    %690 = vmatprep.subr.mxu0 0.0
    %691 = vmatpush1.msra.mxu0 %v176
    %692 = vmatprep.subr.mxu0 0.0
    %693 = vmatpush1.msra.mxu0 %v177
    %694 = vmatprep.subr.mxu0 0.0
    %695 = vmatpush1.msra.mxu0 %v178
    %696 = vmatprep.subr.mxu0 0.0
    %697 = vmatpush1.msra.mxu0 %v179
    %698 = vmatprep.subr.mxu0 0.0
    %699 = vmatpush1.msra.mxu0 %v180
    %700 = vmatprep.subr.mxu0 0.0
    %701 = vmatpush1.msra.mxu0 %v181
    %702 = vmatprep.subr.mxu0 0.0
    %703 = vmatpush1.msra.mxu0 %v182
    %704 = vmatprep.subr.mxu0 0.0
    %705 = vmatpush1.msra.mxu0 %v183
    %706 = vmatprep.subr.mxu0 0.0
    %707 = vmatpush1.msra.mxu0 %v184
    %708 = vmatprep.subr.mxu0 0.0
    %709 = vmatpush1.msra.mxu0 %v185
    %710 = vmatprep.subr.mxu0 0.0
    %711 = vmatpush1.msra.mxu0 %v186
    %712 = vmatprep.subr.mxu0 0.0
    %713 = vmatpush1.msra.mxu0 %v187
    %714 = vmatprep.subr.mxu0 0.0
    %715 = vmatpush1.msra.mxu0 %v188
    %716 = vmatprep.subr.mxu0 0.0
    %717 = vmatpush1.msra.mxu0 %v189
    %718 = vmatprep.subr.mxu0 0.0
    %719 = vmatpush1.msra.mxu0 %v190
    %720 = vmatprep.subr.mxu0 0.0
    %721 = vmatpush1.msra.mxu0 %v191
    %722 = vmatprep.subr.mxu0 0.0
    %723 = vmatpush1.msra.mxu0 %v192
    %724 = vmatprep.subr.mxu0 0.0
    %725 = vmatpush1.msra.mxu0 %v193
    %726 = vmatprep.subr.mxu0 0.0
    %727 = vmatpush1.msra.mxu0 %v194
    %728 = vmatprep.subr.mxu0 0.0
    %729 = vmatpush1.msra.mxu0 %v195
    %730 = vmatprep.subr.mxu0 0.0
    %731 = vmatpush1.msra.mxu0 %v196
    %732 = vmatprep.mubr.f32.mxu0 %v353
    %733 = vmatmul.mubr.f32.gmra.mrb[0].mxu0 %v345
    %v734 = vpop.f32.mrb[0].mxu0
    %v735 = vadd.f32 %v665, %v734
    %v736 = vpop.f32.mrb[0].mxu0
    %737 = vdwg.mxu0
    %738 = vmatprep.subr.mxu0 0.0
    %739 = vmatpush1.msra.mxu0 %v197
    %740 = vmatprep.subr.mxu0 0.0
    %741 = vmatpush1.msra.mxu0 %v198
    %742 = vmatprep.subr.mxu0 0.0
    %743 = vmatpush1.msra.mxu0 %v199
    %744 = vmatprep.subr.mxu0 0.0
    %745 = vmatpush1.msra.mxu0 %v200
    %746 = vmatprep.subr.mxu0 0.0
    %747 = vmatpush1.msra.mxu0 %v201
    %748 = vmatprep.subr.mxu0 0.0
    %749 = vmatpush1.msra.mxu0 %v202
    %750 = vmatprep.subr.mxu0 0.0
    %751 = vmatpush1.msra.mxu0 %v203
    %752 = vmatprep.subr.mxu0 0.0
    %753 = vmatpush1.msra.mxu0 %v204
    %754 = vmatprep.subr.mxu0 0.0
    %755 = vmatpush1.msra.mxu0 %v205
    %756 = vmatprep.subr.mxu0 0.0
    %757 = vmatpush1.msra.mxu0 %v206
    %758 = vmatprep.subr.mxu0 0.0
    %759 = vmatpush1.msra.mxu0 %v207
    %760 = vmatprep.subr.mxu0 0.0
    %761 = vmatpush1.msra.mxu0 %v208
    %762 = vmatprep.subr.mxu0 0.0
    %763 = vmatpush1.msra.mxu0 %v209
    %764 = vmatprep.subr.mxu0 0.0
    %765 = vmatpush1.msra.mxu0 %v210
    %766 = vmatprep.subr.mxu0 0.0
    %767 = vmatpush1.msra.mxu0 %v211
    %768 = vmatprep.subr.mxu0 0.0
    %769 = vmatpush1.msra.mxu0 %v212
    %770 = vmatprep.subr.mxu0 0.0
    %771 = vmatpush1.msra.mxu0 %v213
    %772 = vmatprep.subr.mxu0 0.0
    %773 = vmatpush1.msra.mxu0 %v214
    %774 = vmatprep.subr.mxu0 0.0
    %775 = vmatpush1.msra.mxu0 %v215
    %776 = vmatprep.subr.mxu0 0.0
    %777 = vmatpush1.msra.mxu0 %v216
    %778 = vmatprep.subr.mxu0 0.0
    %779 = vmatpush1.msra.mxu0 %v217
    %780 = vmatprep.subr.mxu0 0.0
    %781 = vmatpush1.msra.mxu0 %v218
    %782 = vmatprep.subr.mxu0 0.0
    %783 = vmatpush1.msra.mxu0 %v219
    %784 = vmatprep.subr.mxu0 0.0
    %785 = vmatpush1.msra.mxu0 %v220
    %786 = vmatprep.subr.mxu0 0.0
    %787 = vmatpush1.msra.mxu0 %v221
    %788 = vmatprep.subr.mxu0 0.0
    %789 = vmatpush1.msra.mxu0 %v222
    %790 = vmatprep.subr.mxu0 0.0
    %791 = vmatpush1.msra.mxu0 %v223
    %792 = vmatprep.subr.mxu0 0.0
    %793 = vmatpush1.msra.mxu0 %v224
    %794 = vmatprep.subr.mxu0 0.0
    %795 = vmatpush1.msra.mxu0 %v225
    %796 = vmatprep.subr.mxu0 0.0
    %797 = vmatpush1.msra.mxu0 %v226
    %798 = vmatprep.subr.mxu0 0.0
    %799 = vmatpush1.msra.mxu0 %v227
    %800 = vmatprep.subr.mxu0 0.0
    %801 = vmatpush1.msra.mxu0 %v228
    %802 = vmatprep.mubr.f32.mxu0 %v354
    %803 = vmatmul.mubr.f32.gmra.mrb[0].mxu0 %v352
    %v804 = vpop.f32.mrb[0].mxu0
    %v805 = vadd.f32 %v735, %v804
    %v806 = vpop.f32.mrb[0].mxu0
    %807 = vdwg.mxu0
    %808 = vmatprep.subr.mxu0 0.0
    %809 = vmatpush1.msra.mxu0 %v229
    %810 = vmatprep.subr.mxu0 0.0
    %811 = vmatpush1.msra.mxu0 %v230
    %812 = vmatprep.subr.mxu0 0.0
    %813 = vmatpush1.msra.mxu0 %v231
    %814 = vmatprep.subr.mxu0 0.0
    %815 = vmatpush1.msra.mxu0 %v232
    %816 = vmatprep.subr.mxu0 0.0
    %817 = vmatpush1.msra.mxu0 %v233
    %818 = vmatprep.subr.mxu0 0.0
    %819 = vmatpush1.msra.mxu0 %v234
    %820 = vmatprep.subr.mxu0 0.0
    %821 = vmatpush1.msra.mxu0 %v235
    %822 = vmatprep.subr.mxu0 0.0
    %823 = vmatpush1.msra.mxu0 %v236
    %824 = vmatprep.subr.mxu0 0.0
    %825 = vmatpush1.msra.mxu0 %v237
    %826 = vmatprep.subr.mxu0 0.0
    %827 = vmatpush1.msra.mxu0 %v238
    %828 = vmatprep.subr.mxu0 0.0
    %829 = vmatpush1.msra.mxu0 %v239
    %830 = vmatprep.subr.mxu0 0.0
    %831 = vmatpush1.msra.mxu0 %v240
    %832 = vmatprep.subr.mxu0 0.0
    %833 = vmatpush1.msra.mxu0 %v241
    %834 = vmatprep.subr.mxu0 0.0
    %835 = vmatpush1.msra.mxu0 %v242
    %836 = vmatprep.subr.mxu0 0.0
    %837 = vmatpush1.msra.mxu0 %v243
    %838 = vmatprep.subr.mxu0 0.0
    %839 = vmatpush1.msra.mxu0 %v244
    %840 = vmatprep.subr.mxu0 0.0
    %841 = vmatpush1.msra.mxu0 %v245
    %842 = vmatprep.subr.mxu0 0.0
    %843 = vmatpush1.msra.mxu0 %v246
    %844 = vmatprep.subr.mxu0 0.0
    %845 = vmatpush1.msra.mxu0 %v247
    %846 = vmatprep.subr.mxu0 0.0
    %847 = vmatpush1.msra.mxu0 %v248
    %848 = vmatprep.subr.mxu0 0.0
    %849 = vmatpush1.msra.mxu0 %v249
    %850 = vmatprep.subr.mxu0 0.0
    %851 = vmatpush1.msra.mxu0 %v250
    %852 = vmatprep.subr.mxu0 0.0
    %853 = vmatpush1.msra.mxu0 %v251
    %854 = vmatprep.subr.mxu0 0.0
    %855 = vmatpush1.msra.mxu0 %v252
    %856 = vmatprep.subr.mxu0 0.0
    %857 = vmatpush1.msra.mxu0 %v253
    %858 = vmatprep.subr.mxu0 0.0
    %859 = vmatpush1.msra.mxu0 %v254
    %860 = vmatprep.subr.mxu0 0.0
    %861 = vmatpush1.msra.mxu0 %v255
    %862 = vmatprep.subr.mxu0 0.0
    %863 = vmatpush1.msra.mxu0 %v256
    %864 = vmatprep.subr.mxu0 0.0
    %865 = vmatpush1.msra.mxu0 %v257
    %866 = vmatprep.subr.mxu0 0.0
    %867 = vmatpush1.msra.mxu0 %v258
    %868 = vmatprep.subr.mxu0 0.0
    %869 = vmatpush1.msra.mxu0 %v259
    %870 = vmatprep.subr.mxu0 0.0
    %871 = vmatpush1.msra.mxu0 %v260
    %872 = vmatprep.mubr.f32.mxu0 %v370
    %873 = vmatmul.mubr.f32.gmra.mrb[0].mxu0 %v362
    %v874 = vpop.f32.mrb[0].mxu0
    %v875 = vadd.f32 %v805, %v874
    %v876 = vpop.f32.mrb[0].mxu0
    %877 = vdwg.mxu0
    %878 = vmatprep.subr.mxu0 0.0
    %879 = vmatpush1.msra.mxu0 %v261
    %880 = vmatprep.subr.mxu0 0.0
    %881 = vmatpush1.msra.mxu0 %v262
    %882 = vmatprep.subr.mxu0 0.0
    %883 = vmatpush1.msra.mxu0 %v263
    %884 = vmatprep.subr.mxu0 0.0
    %885 = vmatpush1.msra.mxu0 %v264
    %886 = vmatprep.subr.mxu0 0.0
    %887 = vmatpush1.msra.mxu0 %v265
    %888 = vmatprep.subr.mxu0 0.0
    %889 = vmatpush1.msra.mxu0 %v266
    %890 = vmatprep.subr.mxu0 0.0
    %891 = vmatpush1.msra.mxu0 %v267
    %892 = vmatprep.subr.mxu0 0.0
    %893 = vmatpush1.msra.mxu0 %v268
    %894 = vmatprep.subr.mxu0 0.0
    %895 = vmatpush1.msra.mxu0 %v269
    %896 = vmatprep.subr.mxu0 0.0
    %897 = vmatpush1.msra.mxu0 %v270
    %898 = vmatprep.subr.mxu0 0.0
    %899 = vmatpush1.msra.mxu0 %v271
    %900 = vmatprep.subr.mxu0 0.0
    %901 = vmatpush1.msra.mxu0 %v272
    %902 = vmatprep.subr.mxu0 0.0
    %903 = vmatpush1.msra.mxu0 %v273
    %904 = vmatprep.subr.mxu0 0.0
    %905 = vmatpush1.msra.mxu0 %v274
    %906 = vmatprep.subr.mxu0 0.0
    %907 = vmatpush1.msra.mxu0 %v275
    %908 = vmatprep.subr.mxu0 0.0
    %909 = vmatpush1.msra.mxu0 %v276
    %910 = vmatprep.subr.mxu0 0.0
    %911 = vmatpush1.msra.mxu0 %v277
    %912 = vmatprep.subr.mxu0 0.0
    %913 = vmatpush1.msra.mxu0 %v278
    %914 = vmatprep.subr.mxu0 0.0
    %915 = vmatpush1.msra.mxu0 %v279
    %916 = vmatprep.subr.mxu0 0.0
    %917 = vmatpush1.msra.mxu0 %v280
    %918 = vmatprep.subr.mxu0 0.0
    %919 = vmatpush1.msra.mxu0 %v281
    %920 = vmatprep.subr.mxu0 0.0
    %921 = vmatpush1.msra.mxu0 %v282
    %922 = vmatprep.subr.mxu0 0.0
    %923 = vmatpush1.msra.mxu0 %v283
    %924 = vmatprep.subr.mxu0 0.0
    %925 = vmatpush1.msra.mxu0 %v284
    %926 = vmatprep.subr.mxu0 0.0
    %927 = vmatpush1.msra.mxu0 %v285
    %928 = vmatprep.subr.mxu0 0.0
    %929 = vmatpush1.msra.mxu0 %v286
    %930 = vmatprep.subr.mxu0 0.0
    %931 = vmatpush1.msra.mxu0 %v287
    %932 = vmatprep.subr.mxu0 0.0
    %933 = vmatpush1.msra.mxu0 %v288
    %934 = vmatprep.subr.mxu0 0.0
    %935 = vmatpush1.msra.mxu0 %v289
    %936 = vmatprep.subr.mxu0 0.0
    %937 = vmatpush1.msra.mxu0 %v290
    %938 = vmatprep.subr.mxu0 0.0
    %939 = vmatpush1.msra.mxu0 %v291
    %940 = vmatprep.subr.mxu0 0.0
    %941 = vmatpush1.msra.mxu0 %v292
    %942 = vmatprep.mubr.f32.mxu0 %v371
    %943 = vmatmul.mubr.f32.gmra.mrb[0].mxu0 %v369
    %v944 = vpop.f32.mrb[0].mxu0
    %v945 = vadd.f32 %v875, %v944
    %v946 = vpop.f32.mrb[0].mxu0
    %947 = vdwg.mxu0
    %v948 = vld [vmem:[%s5] sm:$0x1]
    %v950 = vlaneseq
    %v951 = vshrl.u32 %v950, 7
    %v952 = vsub.s32 0, %v951
    %v953 = vrot.slane %v948, %v952
    %v955 = vsub.f32 %v945, %v953
    %v956 = vld [vmem:[%s6] sm:$0x1]
    %v957 = vadd.f32 %v956, 1e-05
    %v958 = vrsqrt.pop %v957
    %v960 = vlaneseq
    %v961 = vshrl.u32 %v960, 7
    %v962 = vsub.s32 0, %v961
    %v963 = vrot.slane %v958, %v962
    %v965 = vmul.f32 %v955, %v963
    %v966 = vld [vmem:[%s3] sm:$0x1]
    %v968 = vlaneseq
    %v969 = vshrl.u32 %v968, 7
    %v970 = vsub.s32 0, %v969
    %v971 = vrot.slane %v966, %v970
    %v973 = vmul.f32 %v965, %v971
    %v974 = vld [vmem:[%s4] sm:$0x1]
    %v976 = vlaneseq
    %v977 = vshrl.u32 %v976, 7
    %v978 = vsub.s32 0, %v977
    %v979 = vrot.slane %v974, %v978
    %v981 = vadd.f32 %v973, %v979
    %v982 = vmax.f32 %v981, 0.0
    %v983 = vld [vmem:[%s7] sm:$0xff]
    %v984 = vld [vmem:[%s7 + $0x8] sm:$0xff]
    %v985 = vld [vmem:[%s7 + $0x10] sm:$0xff]
    %v986 = vld [vmem:[%s7 + $0x18] sm:$0xff]
    %v987 = vld [vmem:[%s8] sm:$0x1]
    %v989 = vlaneseq
    %v990 = vshrl.u32 %v989, 7
    %v991 = vsub.s32 0, %v990
    %v992 = vrot.slane %v987, %v991
    %vm994 = vcmask 261120
    %v996 = vsel %vm994, %v982, 0
    %998 = vmatprep.subr.mxu0 0.0
    %999 = vmatpush1.msra.mxu0 %v983
    %1000 = vmatprep.subr.mxu0 0.0
    %1001 = vmatpush1.msra.mxu0 %v984
    %1002 = vmatprep.subr.mxu0 0.0
    %1003 = vmatpush1.msra.mxu0 %v985
    %1004 = vmatprep.subr.mxu0 0.0
    %1005 = vmatpush1.msra.mxu0 %v986
    %1006 = vmatprep.subr.mxu0 0.0
    %1007 = vmatpush1.msra.mxu0 0.0
    %1008 = vmatprep.subr.mxu0 0.0
    %1009 = vmatpush1.msra.mxu0 0.0
    %1010 = vmatprep.subr.mxu0 0.0
    %1011 = vmatpush1.msra.mxu0 0.0
    %1012 = vmatprep.subr.mxu0 0.0
    %1013 = vmatpush1.msra.mxu0 0.0
    %1014 = vmatprep.subr.mxu0 0.0
    %1015 = vmatpush1.msra.mxu0 0.0
    %1016 = vmatprep.subr.mxu0 0.0
    %1017 = vmatpush1.msra.mxu0 0.0
    %1018 = vmatprep.subr.mxu0 0.0
    %1019 = vmatpush1.msra.mxu0 0.0
    %1020 = vmatprep.subr.mxu0 0.0
    %1021 = vmatpush1.msra.mxu0 0.0
    %1022 = vmatprep.subr.mxu0 0.0
    %1023 = vmatpush1.msra.mxu0 0.0
    %1024 = vmatprep.subr.mxu0 0.0
    %1025 = vmatpush1.msra.mxu0 0.0
    %1026 = vmatprep.subr.mxu0 0.0
    %1027 = vmatpush1.msra.mxu0 0.0
    %1028 = vmatprep.subr.mxu0 0.0
    %1029 = vmatpush1.msra.mxu0 0.0
    %1030 = vmatprep.subr.mxu0 0.0
    %1031 = vmatpush1.msra.mxu0 0.0
    %1032 = vmatprep.subr.mxu0 0.0
    %1033 = vmatpush1.msra.mxu0 0.0
    %1034 = vmatprep.subr.mxu0 0.0
    %1035 = vmatpush1.msra.mxu0 0.0
    %1036 = vmatprep.subr.mxu0 0.0
    %1037 = vmatpush1.msra.mxu0 0.0
    %1038 = vmatprep.subr.mxu0 0.0
    %1039 = vmatpush1.msra.mxu0 0.0
    %1040 = vmatprep.subr.mxu0 0.0
    %1041 = vmatpush1.msra.mxu0 0.0
    %1042 = vmatprep.subr.mxu0 0.0
    %1043 = vmatpush1.msra.mxu0 0.0
    %1044 = vmatprep.subr.mxu0 0.0
    %1045 = vmatpush1.msra.mxu0 0.0
    %1046 = vmatprep.subr.mxu0 0.0
    %1047 = vmatpush1.msra.mxu0 0.0
    %1048 = vmatprep.subr.mxu0 0.0
    %1049 = vmatpush1.msra.mxu0 0.0
    %1050 = vmatprep.subr.mxu0 0.0
    %1051 = vmatpush1.msra.mxu0 0.0
    %1052 = vmatprep.subr.mxu0 0.0
    %1053 = vmatpush1.msra.mxu0 0.0
    %1054 = vmatprep.subr.mxu0 0.0
    %1055 = vmatpush1.msra.mxu0 0.0
    %1056 = vmatprep.subr.mxu0 0.0
    %1057 = vmatpush1.msra.mxu0 0.0
    %1058 = vmatprep.subr.mxu0 0.0
    %1059 = vmatpush1.msra.mxu0 0.0
    %1060 = vmatprep.subr.mxu0 0.0
    %1061 = vmatpush1.msra.mxu0 0.0
    %1062 = vmatprep.mubr.f32.mxu0 0.0
    %1063 = vmatmul.mubr.f32.gmra.mrb[0].mxu0 %v996
    %v1064 = vpop.f32.mrb[0].mxu0
    %v1065 = vadd.f32 %v992, %v1064
    %v1066 = vpop.f32.mrb[0].mxu0
    %1067 = vdwg.mxu0
    %1068 = vst [vmem:[#allocation2] sm:$0x3] %v1065
    // Predicated region
    $region38: #{gnn_forward.3} parent=1 // pred_check
      _
    $region39: #{gnn_forward.3} parent=1 // pred_check_branch
      %1070 = sbr.rel (0) target = $region41
    $region40: #{gnn_forward.3} parent=1 // pred_region
      %s1072 = ssub.s32 32, 32
      %1073 = vsyncadd [#allocation3], %s1072
      %s1075 = sshll.u32 [#allocation2], 4
      %s1076 = int_to_ptr.vmem [resolvable:$true] %s1075
      %1078 = dma.vmem_to_hbm [thread:$0]  %s1076, 32, %s9, [#allocation3]
    $region41: #{gnn_forward.3} parent=1 // pred_fallthru
      _
    // Predicated region
    $region42: #{gnn_forward.3} parent=1 // pred_check
      _
    $region43: #{gnn_forward.3} parent=1 // pred_check_branch
      %1080 = sbr.rel (0) target = $region45
    $region44: #{gnn_forward.3} parent=1 // pred_region
      %1081 = dma.done [#allocation3], 32
    $region45: #{gnn_forward.3} parent=1 // pred_fallthru
      _
    %1082 = vsyncpa [#allocation3], 1

</llo_original>
